<compile_context>
chip_gen: v7x
topology: tpu7x:2x2x1
jax: 0.10.0
libtpu: 0.0.40
codegen_flags: <defaults>
</compile_context>

<pallas_src>
import functools
import math

import jax
import jax.numpy as jnp
from jax.experimental import pallas as pl
from jax.experimental.pallas import tpu as pltpu


_CPARAMS = pltpu.CompilerParams(
    dimension_semantics=("parallel",),
    vmem_limit_bytes=48 * 1024 * 1024,   # > 32 MiB default, within v7x's 64 MiB
)


def _row_tile(rows):
    """Largest row tile (<=512) dividing `rows`; full slab if it already fits."""
    if rows <= 512:
        return rows
    for t in (512, 256, 128, 64, 32, 16, 8):
        if rows % t == 0:
            return t
    return rows


def _layer_norm(v, gamma, beta, eps=1e-5):
    mean = jnp.mean(v, axis=-1, keepdims=True)
    var = jnp.mean(jnp.square(v - mean), axis=-1, keepdims=True)
    return gamma * ((v - mean) * jax.lax.rsqrt(var + eps)) + beta


# ------------------------------ Pallas kernels -------------------------------

def _linear_kernel(x_ref, w_ref, b_ref, o_ref):
    # bf16 operands, f32 accumulation on the MXU.
    x = x_ref[...].astype(jnp.bfloat16)
    o_ref[...] = (jnp.dot(x, w_ref[...], preferred_element_type=jnp.float32)
                  + b_ref[...])


def _attention_kernel(*refs, masked, sm_scale):
    if masked:
        q_ref, k_ref, v_ref, mask_ref, o_ref = refs
    else:
        q_ref, k_ref, v_ref, o_ref = refs
    # (H, Sq, hd) / (H, Sk, hd): all heads batched into the leading einsum dim.
    q = (q_ref[0] * sm_scale).astype(jnp.bfloat16)   # fold scale into q (O(S*hd))
    k = k_ref[0].astype(jnp.bfloat16)
    v = v_ref[0].astype(jnp.bfloat16)
    s = jnp.einsum('hqd,hkd->hqk', q, k, preferred_element_type=jnp.float32)
    if masked:
        s = s + mask_ref[...][None, :, :]
    m = jnp.max(s, axis=-1, keepdims=True)
    e = jnp.exp(s - m)
    p = e * pl.reciprocal(jnp.sum(e, axis=-1, keepdims=True), approx=True)
    o_ref[0] = jnp.einsum('hqk,hkd->hqd', p.astype(jnp.bfloat16), v,
                          preferred_element_type=jnp.float32)


def _proj_add_norm_kernel(ctx_ref, y_ref, w_ref, b_ref, g_ref, beta_ref, o_ref):
    # out = LayerNorm(y + ctx @ W + b)   (attention output projection fused in)
    ctx = ctx_ref[...].astype(jnp.bfloat16)
    proj = jnp.dot(ctx, w_ref[...], preferred_element_type=jnp.float32) + b_ref[...]
    o_ref[...] = _layer_norm(y_ref[...] + proj, g_ref[...], beta_ref[...])


def _ffn_add_norm_kernel(y_ref, w1_ref, b1_ref, w2_ref, b2_ref, g_ref, beta_ref,
                         o_ref):
    # out = LayerNorm(y + W2 @ relu(W1 @ y + b1) + b2)
    y = y_ref[...]
    h = jnp.dot(y.astype(jnp.bfloat16), w1_ref[...],
                preferred_element_type=jnp.float32) + b1_ref[...]
    h = jnp.maximum(h, 0.0)
    f = jnp.dot(h.astype(jnp.bfloat16), w2_ref[...],
                preferred_element_type=jnp.float32) + b2_ref[...]
    o_ref[...] = _layer_norm(y + f, g_ref[...], beta_ref[...])


# ------------------------------ pallas wrappers -------------------------------

def _linear(x2d, w, b):
    R, K = x2d.shape
    N = w.shape[1]
    tr = _row_tile(R)
    return pl.pallas_call(
        _linear_kernel,
        out_shape=jax.ShapeDtypeStruct((R, N), jnp.float32),
        grid=(R // tr,),
        in_specs=[pl.BlockSpec((tr, K), lambda i: (i, 0)),
                  pl.BlockSpec((K, N), lambda i: (0, 0)),   # resident weight
                  pl.BlockSpec((1, N), lambda i: (0, 0))],
        out_specs=pl.BlockSpec((tr, N), lambda i: (i, 0)),
        compiler_params=_CPARAMS,
    )(x2d, w, b)


def _attention(q, k, v, sm_scale, mask=None):
    # q: (B, H, Sq, hd); k, v: (B, H, Sk, hd); mask: additive (Sq, Sk) or None.
    B, H, Sq, hd = q.shape
    Sk = k.shape[2]
    in_specs = [pl.BlockSpec((1, H, Sq, hd), lambda b: (b, 0, 0, 0)),
                pl.BlockSpec((1, H, Sk, hd), lambda b: (b, 0, 0, 0)),
                pl.BlockSpec((1, H, Sk, hd), lambda b: (b, 0, 0, 0))]
    args = [q, k, v]
    if mask is not None:
        in_specs.append(pl.BlockSpec((Sq, Sk), lambda b: (0, 0)))
        args.append(mask)
    return pl.pallas_call(
        functools.partial(_attention_kernel, masked=mask is not None,
                          sm_scale=sm_scale),
        out_shape=jax.ShapeDtypeStruct((B, H, Sq, hd), jnp.float32),
        grid=(B,),
        in_specs=in_specs,
        out_specs=pl.BlockSpec((1, H, Sq, hd), lambda b: (b, 0, 0, 0)),
        compiler_params=_CPARAMS,
    )(*args)


def _proj_add_norm(ctx2d, y2d, w, b, g, beta):
    R, D = y2d.shape
    tr = _row_tile(R)
    return pl.pallas_call(
        _proj_add_norm_kernel,
        out_shape=jax.ShapeDtypeStruct((R, D), jnp.float32),
        grid=(R // tr,),
        in_specs=[pl.BlockSpec((tr, D), lambda i: (i, 0)),
                  pl.BlockSpec((tr, D), lambda i: (i, 0)),
                  pl.BlockSpec((D, D), lambda i: (0, 0)),
                  pl.BlockSpec((1, D), lambda i: (0, 0)),
                  pl.BlockSpec((1, D), lambda i: (0, 0)),
                  pl.BlockSpec((1, D), lambda i: (0, 0))],
        out_specs=pl.BlockSpec((tr, D), lambda i: (i, 0)),
        input_output_aliases={1: 0},      # residual stream updated in place
        compiler_params=_CPARAMS,
    )(ctx2d, y2d, w, b, g, beta)


def _ffn_add_norm(y2d, w1, b1, w2, b2, g, beta):
    R, D = y2d.shape
    F = w1.shape[1]
    tr = _row_tile(R)
    return pl.pallas_call(
        _ffn_add_norm_kernel,
        out_shape=jax.ShapeDtypeStruct((R, D), jnp.float32),
        grid=(R // tr,),
        in_specs=[pl.BlockSpec((tr, D), lambda i: (i, 0)),
                  pl.BlockSpec((D, F), lambda i: (0, 0)),
                  pl.BlockSpec((1, F), lambda i: (0, 0)),
                  pl.BlockSpec((F, D), lambda i: (0, 0)),
                  pl.BlockSpec((1, D), lambda i: (0, 0)),
                  pl.BlockSpec((1, D), lambda i: (0, 0)),
                  pl.BlockSpec((1, D), lambda i: (0, 0))],
        out_specs=pl.BlockSpec((tr, D), lambda i: (i, 0)),
        input_output_aliases={0: 0},      # residual stream updated in place
        compiler_params=_CPARAMS,
    )(y2d, w1, b1, w2, b2, g, beta)


# ------------------------------ layer / decoder -------------------------------

def _split_heads(t2d, batch, seq, num_heads):
    d = t2d.shape[-1]
    hd = d // num_heads
    return t2d.reshape(batch, seq, num_heads, hd).transpose(0, 2, 1, 3)


def _merge_heads(t4d):
    B, H, S, hd = t4d.shape
    return t4d.transpose(0, 2, 1, 3).reshape(B * S, H * hd)


def decoder_layer(x2d, y2d, B, S, Sx, self_mask, p, num_heads):
    D = y2d.shape[-1]
    hd = D // num_heads
    sm_scale = 1.0 / math.sqrt(hd)

    # ---- masked multi-head self-attention + add & norm ----
    qkv = _linear(y2d, p['wqkv'], p['bqkv'])                 # (B*S, 3D), [Q|K|V]
    q, k, v = jnp.split(qkv, 3, axis=-1)
    ctx = _attention(_split_heads(q, B, S, num_heads),
                     _split_heads(k, B, S, num_heads),
                     _split_heads(v, B, S, num_heads),
                     sm_scale, mask=self_mask)
    y2d = _proj_add_norm(_merge_heads(ctx), y2d,
                         p['wo'], p['bo'], p['g1'], p['be1'])

    # ---- multi-head cross-attention (reference passes mask=None) + add & norm
    qc = _linear(y2d, p['wq'], p['bq'])                      # (B*S, D)
    kvc = _linear(x2d, p['wkv'], p['bkv'])                   # (B*Sx, 2D), [K|V]
    kc, vc = jnp.split(kvc, 2, axis=-1)
    ctx = _attention(_split_heads(qc, B, S, num_heads),
                     _split_heads(kc, B, Sx, num_heads),
                     _split_heads(vc, B, Sx, num_heads),
                     sm_scale, mask=None)
    y2d = _proj_add_norm(_merge_heads(ctx), y2d,
                         p['wco'], p['bco'], p['g2'], p['be2'])

    # ---- position-wise feed-forward + add & norm ----
    y2d = _ffn_add_norm(y2d, p['wf1'], p['bf1'], p['wf2'], p['bf2'],
                        p['g3'], p['be3'])
    return y2d


def positional_encoding(max_len, d_model):
    even_i = jnp.arange(0, d_model, 2, dtype=jnp.float32)
    denom = jnp.power(10000.0, even_i / d_model)
    pos = jnp.arange(max_len, dtype=jnp.float32).reshape(max_len, 1)
    even_pe = jnp.sin(pos / denom)
    odd_pe = jnp.cos(pos / denom)
    return jnp.stack([even_pe, odd_pe], axis=2).reshape(max_len, d_model)


@functools.partial(jax.jit, static_argnums=(5,))
def decoder_forward(params, x, y_tokens, self_attention_mask,
                    cross_attention_mask, num_heads):
    # SentenceEmbedding: embedding lookup + sinusoidal positional encoding
    # (dropout identity in eval).
    # TODO(synk): batch_tokenize (raw strings + START/END/PAD handling) is
    # host-side preprocessing with no Pallas equivalent; token ids are input.
    del cross_attention_mask  # unused: reference calls cross-attention with mask=None
    B, S = y_tokens.shape
    Sx = x.shape[1]
    D = params['embedding'].shape[1]
    pe = positional_encoding(S, D)
    y = params['embedding'][y_tokens] + pe[None, :, :]
    y2d = y.reshape(B * S, D).astype(jnp.float32)
    x2d = x.reshape(B * Sx, D).astype(jnp.float32)
    for lp in params['layers']:
        y2d = decoder_layer(x2d, y2d, B, S, Sx, self_attention_mask, lp, num_heads)
    return y2d.reshape(B, S, D)


def init_params(key, d_model, num_heads, ffn_hidden, num_layers, vocab_size):
    assert d_model % num_heads == 0
    keys = jax.random.split(key, 1 + num_layers)
    params = {
        'embedding': jax.random.normal(keys[0], (vocab_size, d_model),
                                       jnp.float32) * 0.02,
        'layers': [],
    }
    for li in range(num_layers):
        k = jax.random.split(keys[1 + li], 10)

        def nrm(kk, shape):
            # weights stored bf16 (halves weight DMA; f32 accumulation in-kernel)
            return (jax.random.normal(kk, shape, jnp.float32) * 0.02).astype(jnp.bfloat16)

        wq_s = nrm(k[0], (d_model, d_model))
        wk_s = nrm(k[1], (d_model, d_model))
        wv_s = nrm(k[2], (d_model, d_model))
        wk_c = nrm(k[3], (d_model, d_model))
        wv_c = nrm(k[4], (d_model, d_model))
        layer = dict(
            # self-attention: fused QKV stored de-interleaved as [Q | K | V]
            wqkv=jnp.concatenate([wq_s, wk_s, wv_s], axis=1),
            bqkv=jnp.zeros((1, 3 * d_model), jnp.float32),
            wo=nrm(k[5], (d_model, d_model)), bo=jnp.zeros((1, d_model), jnp.float32),
            g1=jnp.ones((1, d_model), jnp.float32), be1=jnp.zeros((1, d_model), jnp.float32),
            # cross-attention: Q from y, fused KV over x stored as [K | V]
            wq=nrm(k[6], (d_model, d_model)), bq=jnp.zeros((1, d_model), jnp.float32),
            wkv=jnp.concatenate([wk_c, wv_c], axis=1),
            bkv=jnp.zeros((1, 2 * d_model), jnp.float32),
            wco=nrm(k[7], (d_model, d_model)), bco=jnp.zeros((1, d_model), jnp.float32),
            g2=jnp.ones((1, d_model), jnp.float32), be2=jnp.zeros((1, d_model), jnp.float32),
            # feed-forward
            wf1=nrm(k[8], (d_model, ffn_hidden)), bf1=jnp.zeros((1, ffn_hidden), jnp.float32),
            wf2=nrm(k[9], (ffn_hidden, d_model)), bf2=jnp.zeros((1, d_model), jnp.float32),
            g3=jnp.ones((1, d_model), jnp.float32), be3=jnp.zeros((1, d_model), jnp.float32),
        )
        params['layers'].append(layer)
    return params


if __name__ == "__main__":
    B, S, D, H, F, L, V = 2, 8, 32, 4, 64, 2, 32   # batch, seq, d_model, heads, ffn, layers, vocab
    key = jax.random.PRNGKey(0)
    kp, kx, ky = jax.random.split(key, 3)

    params = init_params(kp, D, H, F, L, V)
    x = jax.random.normal(kx, (B, S, D), jnp.float32)          # encoder output
    y_tokens = jax.random.randint(ky, (B, S), 0, V)             # decoder token ids
    # causal additive mask (0 on/below diag, -1e9 above), as in the reference NEG_INFTY mask
    self_attention_mask = jnp.triu(jnp.ones((S, S), jnp.float32), k=1) * -1e9
    cross_attention_mask = jnp.zeros((S, S), jnp.float32)       # unused (reference passes None)

    out = decoder_forward(params, x, y_tokens, self_attention_mask,
                          cross_attention_mask, H)
    out = jax.block_until_ready(out)
    assert out.shape == (B, S, D) and out.dtype == jnp.float32
    assert bool(jnp.all(jnp.isfinite(out)))
    print("KERNEL_OK")
</pallas_src>

<mosaic_0001>
module attributes {stable_mosaic.version = 11 : i64} {
  func.func @_linear_kernel(%arg0: i32, %arg1: memref<16x32xf32, #tpu.memory_space<vmem>>, %arg2: memref<32x96xbf16, #tpu.memory_space<vmem>>, %arg3: memref<1x96xf32, #tpu.memory_space<vmem>>, %arg4: memref<16x96xf32, #tpu.memory_space<vmem>>) attributes {dimension_semantics = [#tpu.dimension_semantics<parallel>], iteration_bounds = array<i64: 1>, scalar_prefetch = 0 : i64, scratch_operands = 0 : i64, tpu.core_type = #tpu.core_type<tc>, window_params = [{transform_indices = @transform_0, window_bounds = array<i64: 16, 32>}, {pipeline_mode = #tpu.pipeline_mode<synchronous>, transform_indices = @transform_1, window_bounds = array<i64: 32, 96>}, {pipeline_mode = #tpu.pipeline_mode<synchronous>, transform_indices = @transform_2, window_bounds = array<i64: 1, 96>}, {transform_indices = @transform_3, window_bounds = array<i64: 16, 96>}]} {
    %c0 = arith.constant 0 : index
    %c0_0 = arith.constant 0 : index
    %0 = vector.load %arg1[%c0, %c0_0] : memref<16x32xf32, #tpu.memory_space<vmem>>, vector<16x32xf32>
    %1 = arith.truncf %0 : vector<16x32xf32> to vector<16x32xbf16>
    %c0_1 = arith.constant 0 : index
    %c0_2 = arith.constant 0 : index
    %2 = vector.load %arg2[%c0_1, %c0_2] : memref<32x96xbf16, #tpu.memory_space<vmem>>, vector<32x96xbf16>
    %cst = arith.constant dense<0.000000e+00> : vector<16x96xf32>
    %3 = tpu.matmul %1, %2, %cst {dimension_numbers = #tpu.dot_dimension_numbers<[1], [0], [0], [1], [0, 0, 1, 1], [], []>} : vector<16x32xbf16>, vector<32x96xbf16>, vector<16x96xf32> -> vector<16x96xf32>
    %c0_3 = arith.constant 0 : index
    %c0_4 = arith.constant 0 : index
    %4 = vector.load %arg3[%c0_3, %c0_4] : memref<1x96xf32, #tpu.memory_space<vmem>>, vector<1x96xf32>
    %5 = vector.broadcast %4 : vector<1x96xf32> to vector<16x96xf32>
    %6 = arith.addf %3, %5 : vector<16x96xf32>
    %c0_5 = arith.constant 0 : index
    %c0_6 = arith.constant 0 : index
    %7 = vector.load %arg4[%c0_5, %c0_6] : memref<16x96xf32, #tpu.memory_space<vmem>>, vector<16x96xf32>
    tpu.vector_store %arg4[%c0_5, %c0_6], %6 {strides = array<i32>} : memref<16x96xf32, #tpu.memory_space<vmem>>, vector<16x96xf32>,
    return
  }
  func.func @transform_0(%arg0: i32) -> (i32, i32) {
    %c0_i32 = arith.constant 0 : i32
    %c0_i32_0 = arith.constant 0 : i32
    return %arg0, %c0_i32 : i32, i32
  }
  func.func @transform_1(%arg0: i32) -> (i32, i32) {
    %c0_i32 = arith.constant 0 : i32
    %c0_i32_0 = arith.constant 0 : i32
    %c0_i32_1 = arith.constant 0 : i32
    return %c0_i32, %c0_i32_0 : i32, i32
  }
  func.func @transform_2(%arg0: i32) -> (i32, i32) {
    %c0_i32 = arith.constant 0 : i32
    %c0_i32_0 = arith.constant 0 : i32
    %c0_i32_1 = arith.constant 0 : i32
    return %c0_i32, %c0_i32_0 : i32, i32
  }
  func.func @transform_3(%arg0: i32) -> (i32, i32) {
    %c0_i32 = arith.constant 0 : i32
    %c0_i32_0 = arith.constant 0 : i32
    return %arg0, %c0_i32 : i32, i32
  }
}

module attributes {stable_mosaic.version = 11 : i64} {
  func.func @_proj_add_norm_kernel(%arg0: i32, %arg1: memref<16x32xf32, #tpu.memory_space<vmem>>, %arg2: memref<16x32xf32, #tpu.memory_space<vmem>>, %arg3: memref<32x32xbf16, #tpu.memory_space<vmem>>, %arg4: memref<1x32xf32, #tpu.memory_space<vmem>>, %arg5: memref<1x32xf32, #tpu.memory_space<vmem>>, %arg6: memref<1x32xf32, #tpu.memory_space<vmem>>, %arg7: memref<16x32xf32, #tpu.memory_space<vmem>>) attributes {dimension_semantics = [#tpu.dimension_semantics<parallel>], iteration_bounds = array<i64: 1>, scalar_prefetch = 0 : i64, scratch_operands = 0 : i64, tpu.core_type = #tpu.core_type<tc>, window_params = [{transform_indices = @transform_0, window_bounds = array<i64: 16, 32>}, {transform_indices = @transform_1, window_bounds = array<i64: 16, 32>}, {pipeline_mode = #tpu.pipeline_mode<synchronous>, transform_indices = @transform_2, window_bounds = array<i64: 32, 32>}, {pipeline_mode = #tpu.pipeline_mode<synchronous>, transform_indices = @transform_3, window_bounds = array<i64: 1, 32>}, {pipeline_mode = #tpu.pipeline_mode<synchronous>, transform_indices = @transform_4, window_bounds = array<i64: 1, 32>}, {pipeline_mode = #tpu.pipeline_mode<synchronous>, transform_indices = @transform_5, window_bounds = array<i64: 1, 32>}, {transform_indices = @transform_6, window_bounds = array<i64: 16, 32>}]} {
    %c0 = arith.constant 0 : index
    %c0_0 = arith.constant 0 : index
    %0 = vector.load %arg1[%c0, %c0_0] : memref<16x32xf32, #tpu.memory_space<vmem>>, vector<16x32xf32>
    %1 = arith.truncf %0 : vector<16x32xf32> to vector<16x32xbf16>
    %c0_1 = arith.constant 0 : index
    %c0_2 = arith.constant 0 : index
    %2 = vector.load %arg3[%c0_1, %c0_2] : memref<32x32xbf16, #tpu.memory_space<vmem>>, vector<32x32xbf16>
    %cst = arith.constant dense<0.000000e+00> : vector<16x32xf32>
    %3 = tpu.matmul %1, %2, %cst {dimension_numbers = #tpu.dot_dimension_numbers<[1], [0], [0], [1], [0, 0, 1, 1], [], []>} : vector<16x32xbf16>, vector<32x32xbf16>, vector<16x32xf32> -> vector<16x32xf32>
    %c0_3 = arith.constant 0 : index
    %c0_4 = arith.constant 0 : index
    %4 = vector.load %arg4[%c0_3, %c0_4] : memref<1x32xf32, #tpu.memory_space<vmem>>, vector<1x32xf32>
    %5 = vector.broadcast %4 : vector<1x32xf32> to vector<16x32xf32>
    %6 = arith.addf %3, %5 : vector<16x32xf32>
    %c0_5 = arith.constant 0 : index
    %c0_6 = arith.constant 0 : index
    %7 = vector.load %arg2[%c0_5, %c0_6] : memref<16x32xf32, #tpu.memory_space<vmem>>, vector<16x32xf32>
    %8 = arith.addf %7, %6 : vector<16x32xf32>
    %c0_7 = arith.constant 0 : index
    %c0_8 = arith.constant 0 : index
    %9 = vector.load %arg5[%c0_7, %c0_8] : memref<1x32xf32, #tpu.memory_space<vmem>>, vector<1x32xf32>
    %c0_9 = arith.constant 0 : index
    %c0_10 = arith.constant 0 : index
    %10 = vector.load %arg6[%c0_9, %c0_10] : memref<1x32xf32, #tpu.memory_space<vmem>>, vector<1x32xf32>
    %cst_11 = arith.constant dense<0.000000e+00> : vector<16xf32>
    %11 = vector.multi_reduction <add>, %8, %cst_11 [1] : vector<16x32xf32> to vector<16xf32>
    %12 = vector.shape_cast %11 : vector<16xf32> to vector<16x1xf32>
    %cst_12 = arith.constant 3.200000e+01 : f32
    %13 = vector.broadcast %cst_12 : f32 to vector<16x1xf32>
    %14 = arith.divf %12, %13 : vector<16x1xf32>
    %15 = vector.broadcast %14 : vector<16x1xf32> to vector<16x32xf32>
    %16 = arith.subf %8, %15 : vector<16x32xf32>
    %17 = arith.mulf %16, %16 : vector<16x32xf32>
    %cst_13 = arith.constant dense<0.000000e+00> : vector<16xf32>
    %18 = vector.multi_reduction <add>, %17, %cst_13 [1] : vector<16x32xf32> to vector<16xf32>
    %19 = vector.shape_cast %18 : vector<16xf32> to vector<16x1xf32>
    %cst_14 = arith.constant 3.200000e+01 : f32
    %20 = vector.broadcast %cst_14 : f32 to vector<16x1xf32>
    %21 = arith.divf %19, %20 : vector<16x1xf32>
    %22 = vector.broadcast %14 : vector<16x1xf32> to vector<16x32xf32>
    %23 = arith.subf %8, %22 : vector<16x32xf32>
    %cst_15 = arith.constant 9.99999974E-6 : f32
    %24 = vector.broadcast %cst_15 : f32 to vector<16x1xf32>
    %25 = arith.addf %21, %24 : vector<16x1xf32>
    %26 = math.rsqrt %25 : vector<16x1xf32>
    %27 = vector.broadcast %26 : vector<16x1xf32> to vector<16x32xf32>
    %28 = arith.mulf %23, %27 : vector<16x32xf32>
    %29 = vector.broadcast %9 : vector<1x32xf32> to vector<16x32xf32>
    %30 = arith.mulf %29, %28 : vector<16x32xf32>
    %31 = vector.broadcast %10 : vector<1x32xf32> to vector<16x32xf32>
    %32 = arith.addf %30, %31 : vector<16x32xf32>
    %c0_16 = arith.constant 0 : index
    %c0_17 = arith.constant 0 : index
    %33 = vector.load %arg7[%c0_16, %c0_17] : memref<16x32xf32, #tpu.memory_space<vmem>>, vector<16x32xf32>
    tpu.vector_store %arg7[%c0_16, %c0_17], %32 {strides = array<i32>} : memref<16x32xf32, #tpu.memory_space<vmem>>, vector<16x32xf32>,
    return
  }
  func.func @transform_0(%arg0: i32) -> (i32, i32) {
    %c0_i32 = arith.constant 0 : i32
    %c0_i32_0 = arith.constant 0 : i32
    return %arg0, %c0_i32 : i32, i32
  }
  func.func @transform_1(%arg0: i32) -> (i32, i32) {
    %c0_i32 = arith.constant 0 : i32
    %c0_i32_0 = arith.constant 0 : i32
    return %arg0, %c0_i32 : i32, i32
  }
  func.func @transform_2(%arg0: i32) -> (i32, i32) {
    %c0_i32 = arith.constant 0 : i32
    %c0_i32_0 = arith.constant 0 : i32
    %c0_i32_1 = arith.constant 0 : i32
    return %c0_i32, %c0_i32_0 : i32, i32
  }
  func.func @transform_3(%arg0: i32) -> (i32, i32) {
    %c0_i32 = arith.constant 0 : i32
    %c0_i32_0 = arith.constant 0 : i32
    %c0_i32_1 = arith.constant 0 : i32
    return %c0_i32, %c0_i32_0 : i32, i32
  }
  func.func @transform_4(%arg0: i32) -> (i32, i32) {
    %c0_i32 = arith.constant 0 : i32
    %c0_i32_0 = arith.constant 0 : i32
    %c0_i32_1 = arith.constant 0 : i32
    return %c0_i32, %c0_i32_0 : i32, i32
  }
  func.func @transform_5(%arg0: i32) -> (i32, i32) {
    %c0_i32 = arith.constant 0 : i32
    %c0_i32_0 = arith.constant 0 : i32
    %c0_i32_1 = arith.constant 0 : i32
    return %c0_i32, %c0_i32_0 : i32, i32
  }
  func.func @transform_6(%arg0: i32) -> (i32, i32) {
    %c0_i32 = arith.constant 0 : i32
    %c0_i32_0 = arith.constant 0 : i32
    return %arg0, %c0_i32 : i32, i32
  }
}

module attributes {stable_mosaic.version = 11 : i64} {
  func.func @_attention_kernel(%arg0: i32, %arg1: memref<1x4x8x8xf32, #tpu.memory_space<vmem>>, %arg2: memref<1x4x8x8xf32, #tpu.memory_space<vmem>>, %arg3: memref<1x4x8x8xf32, #tpu.memory_space<vmem>>, %arg4: memref<8x8xf32, #tpu.memory_space<vmem>>, %arg5: memref<1x4x8x8xf32, #tpu.memory_space<vmem>>) attributes {dimension_semantics = [#tpu.dimension_semantics<parallel>], iteration_bounds = array<i64: 2>, scalar_prefetch = 0 : i64, scratch_operands = 0 : i64, tpu.core_type = #tpu.core_type<tc>, window_params = [{transform_indices = @transform_0, window_bounds = array<i64: 1, 4, 8, 8>}, {transform_indices = @transform_1, window_bounds = array<i64: 1, 4, 8, 8>}, {transform_indices = @transform_2, window_bounds = array<i64: 1, 4, 8, 8>}, {pipeline_mode = #tpu.pipeline_mode<synchronous>, transform_indices = @transform_3, window_bounds = array<i64: 8, 8>}, {transform_indices = @transform_4, window_bounds = array<i64: 1, 4, 8, 8>}]} {
    %c0 = arith.constant 0 : index
    %c0_0 = arith.constant 0 : index
    %c0_1 = arith.constant 0 : index
    %c0_2 = arith.constant 0 : index
    %0 = vector.load %arg1[%c0, %c0_0, %c0_1, %c0_2] : memref<1x4x8x8xf32, #tpu.memory_space<vmem>>, vector<1x4x8x8xf32>
    %1 = vector.shape_cast %0 : vector<1x4x8x8xf32> to vector<4x8x8xf32>
    %cst = arith.constant 0.353553385 : f32
    %2 = vector.broadcast %cst : f32 to vector<4x8x8xf32>
    %3 = arith.mulf %1, %2 : vector<4x8x8xf32>
    %4 = arith.truncf %3 : vector<4x8x8xf32> to vector<4x8x8xbf16>
    %c0_3 = arith.constant 0 : index
    %c0_4 = arith.constant 0 : index
    %c0_5 = arith.constant 0 : index
    %c0_6 = arith.constant 0 : index
    %5 = vector.load %arg2[%c0_3, %c0_4, %c0_5, %c0_6] : memref<1x4x8x8xf32, #tpu.memory_space<vmem>>, vector<1x4x8x8xf32>
    %6 = vector.shape_cast %5 : vector<1x4x8x8xf32> to vector<4x8x8xf32>
    %7 = arith.truncf %6 : vector<4x8x8xf32> to vector<4x8x8xbf16>
    %c0_7 = arith.constant 0 : index
    %c0_8 = arith.constant 0 : index
    %c0_9 = arith.constant 0 : index
    %c0_10 = arith.constant 0 : index
    %8 = vector.load %arg3[%c0_7, %c0_8, %c0_9, %c0_10] : memref<1x4x8x8xf32, #tpu.memory_space<vmem>>, vector<1x4x8x8xf32>
    %9 = vector.shape_cast %8 : vector<1x4x8x8xf32> to vector<4x8x8xf32>
    %10 = arith.truncf %9 : vector<4x8x8xf32> to vector<4x8x8xbf16>
    "tpu.trace_start"() <{level = 10 : i32, message = "hqd,hkd->hqk"}> : () -> ()
    %cst_11 = arith.constant dense<0.000000e+00> : vector<4x8x8xf32>
    %11 = tpu.matmul %4, %7, %cst_11 {dimension_numbers = #tpu.dot_dimension_numbers<[2], [2], [1], [1], [0, 0, 0, 1, 1, 1], [0], [0]>} : vector<4x8x8xbf16>, vector<4x8x8xbf16>, vector<4x8x8xf32> -> vector<4x8x8xf32>
    "tpu.trace_stop"() : () -> ()
    %c0_12 = arith.constant 0 : index
    %c0_13 = arith.constant 0 : index
    %12 = vector.load %arg4[%c0_12, %c0_13] : memref<8x8xf32, #tpu.memory_space<vmem>>, vector<8x8xf32>
    %13 = vector.shape_cast %12 : vector<8x8xf32> to vector<1x8x8xf32>
    %14 = vector.broadcast %13 : vector<1x8x8xf32> to vector<4x8x8xf32>
    %15 = arith.addf %11, %14 : vector<4x8x8xf32>
    %cst_14 = arith.constant dense<0xFF800000> : vector<4x8xf32>
    %16 = vector.multi_reduction <maximumf>, %15, %cst_14 [2] : vector<4x8x8xf32> to vector<4x8xf32>
    %17 = vector.shape_cast %16 : vector<4x8xf32> to vector<4x8x1xf32>
    %18 = vector.broadcast %17 : vector<4x8x1xf32> to vector<4x8x8xf32>
    %19 = arith.subf %15, %18 : vector<4x8x8xf32>
    %20 = math.exp %19 : vector<4x8x8xf32>
    %cst_15 = arith.constant dense<0.000000e+00> : vector<4x8xf32>
    %21 = vector.multi_reduction <add>, %20, %cst_15 [2] : vector<4x8x8xf32> to vector<4x8xf32>
    %22 = vector.shape_cast %21 : vector<4x8xf32> to vector<4x8x1xf32>
    %23 = tpu.reciprocal %22 {approx = true} : vector<4x8x1xf32> -> vector<4x8x1xf32>
    %24 = vector.broadcast %23 : vector<4x8x1xf32> to vector<4x8x8xf32>
    %25 = arith.mulf %20, %24 : vector<4x8x8xf32>
    %26 = arith.truncf %25 : vector<4x8x8xf32> to vector<4x8x8xbf16>
    "tpu.trace_start"() <{level = 10 : i32, message = "hqk,hkd->hqd"}> : () -> ()
    %cst_16 = arith.constant dense<0.000000e+00> : vector<4x8x8xf32>
    %27 = tpu.matmul %26, %10, %cst_16 {dimension_numbers = #tpu.dot_dimension_numbers<[2], [1], [1], [2], [0, 0, 0, 1, 1, 2], [0], [0]>} : vector<4x8x8xbf16>, vector<4x8x8xbf16>, vector<4x8x8xf32> -> vector<4x8x8xf32>
    "tpu.trace_stop"() : () -> ()
    %c0_17 = arith.constant 0 : index
    %c0_18 = arith.constant 0 : index
    %c0_19 = arith.constant 0 : index
    %c0_20 = arith.constant 0 : index
    %28 = vector.load %arg5[%c0_17, %c0_18, %c0_19, %c0_20] : memref<1x4x8x8xf32, #tpu.memory_space<vmem>>, vector<1x4x8x8xf32>
    %29 = vector.shape_cast %28 : vector<1x4x8x8xf32> to vector<4x8x8xf32>
    %30 = vector.shape_cast %27 : vector<4x8x8xf32> to vector<1x4x8x8xf32>
    tpu.vector_store %arg5[%c0_17, %c0_18, %c0_19, %c0_20], %30 {strides = array<i32>} : memref<1x4x8x8xf32, #tpu.memory_space<vmem>>, vector<1x4x8x8xf32>,
    return
  }
  func.func @transform_0(%arg0: i32) -> (i32, i32, i32, i32) {
    %c0_i32 = arith.constant 0 : i32
    %c0_i32_0 = arith.constant 0 : i32
    %c0_i32_1 = arith.constant 0 : i32
    %c0_i32_2 = arith.constant 0 : i32
    return %arg0, %c0_i32, %c0_i32_0, %c0_i32_1 : i32, i32, i32, i32
  }
  func.func @transform_1(%arg0: i32) -> (i32, i32, i32, i32) {
    %c0_i32 = arith.constant 0 : i32
    %c0_i32_0 = arith.constant 0 : i32
    %c0_i32_1 = arith.constant 0 : i32
    %c0_i32_2 = arith.constant 0 : i32
    return %arg0, %c0_i32, %c0_i32_0, %c0_i32_1 : i32, i32, i32, i32
  }
  func.func @transform_2(%arg0: i32) -> (i32, i32, i32, i32) {
    %c0_i32 = arith.constant 0 : i32
    %c0_i32_0 = arith.constant 0 : i32
    %c0_i32_1 = arith.constant 0 : i32
    %c0_i32_2 = arith.constant 0 : i32
    return %arg0, %c0_i32, %c0_i32_0, %c0_i32_1 : i32, i32, i32, i32
  }
  func.func @transform_3(%arg0: i32) -> (i32, i32) {
    %c0_i32 = arith.constant 0 : i32
    %c0_i32_0 = arith.constant 0 : i32
    %c0_i32_1 = arith.constant 0 : i32
    return %c0_i32, %c0_i32_0 : i32, i32
  }
  func.func @transform_4(%arg0: i32) -> (i32, i32, i32, i32) {
    %c0_i32 = arith.constant 0 : i32
    %c0_i32_0 = arith.constant 0 : i32
    %c0_i32_1 = arith.constant 0 : i32
    %c0_i32_2 = arith.constant 0 : i32
    return %arg0, %c0_i32, %c0_i32_0, %c0_i32_1 : i32, i32, i32, i32
  }
}

module attributes {stable_mosaic.version = 11 : i64} {
  func.func @_linear_kernel(%arg0: i32, %arg1: memref<16x32xf32, #tpu.memory_space<vmem>>, %arg2: memref<32x32xbf16, #tpu.memory_space<vmem>>, %arg3: memref<1x32xf32, #tpu.memory_space<vmem>>, %arg4: memref<16x32xf32, #tpu.memory_space<vmem>>) attributes {dimension_semantics = [#tpu.dimension_semantics<parallel>], iteration_bounds = array<i64: 1>, scalar_prefetch = 0 : i64, scratch_operands = 0 : i64, tpu.core_type = #tpu.core_type<tc>, window_params = [{transform_indices = @transform_0, window_bounds = array<i64: 16, 32>}, {pipeline_mode = #tpu.pipeline_mode<synchronous>, transform_indices = @transform_1, window_bounds = array<i64: 32, 32>}, {pipeline_mode = #tpu.pipeline_mode<synchronous>, transform_indices = @transform_2, window_bounds = array<i64: 1, 32>}, {transform_indices = @transform_3, window_bounds = array<i64: 16, 32>}]} {
    %c0 = arith.constant 0 : index
    %c0_0 = arith.constant 0 : index
    %0 = vector.load %arg1[%c0, %c0_0] : memref<16x32xf32, #tpu.memory_space<vmem>>, vector<16x32xf32>
    %1 = arith.truncf %0 : vector<16x32xf32> to vector<16x32xbf16>
    %c0_1 = arith.constant 0 : index
    %c0_2 = arith.constant 0 : index
    %2 = vector.load %arg2[%c0_1, %c0_2] : memref<32x32xbf16, #tpu.memory_space<vmem>>, vector<32x32xbf16>
    %cst = arith.constant dense<0.000000e+00> : vector<16x32xf32>
    %3 = tpu.matmul %1, %2, %cst {dimension_numbers = #tpu.dot_dimension_numbers<[1], [0], [0], [1], [0, 0, 1, 1], [], []>} : vector<16x32xbf16>, vector<32x32xbf16>, vector<16x32xf32> -> vector<16x32xf32>
    %c0_3 = arith.constant 0 : index
    %c0_4 = arith.constant 0 : index
    %4 = vector.load %arg3[%c0_3, %c0_4] : memref<1x32xf32, #tpu.memory_space<vmem>>, vector<1x32xf32>
    %5 = vector.broadcast %4 : vector<1x32xf32> to vector<16x32xf32>
    %6 = arith.addf %3, %5 : vector<16x32xf32>
    %c0_5 = arith.constant 0 : index
    %c0_6 = arith.constant 0 : index
    %7 = vector.load %arg4[%c0_5, %c0_6] : memref<16x32xf32, #tpu.memory_space<vmem>>, vector<16x32xf32>
    tpu.vector_store %arg4[%c0_5, %c0_6], %6 {strides = array<i32>} : memref<16x32xf32, #tpu.memory_space<vmem>>, vector<16x32xf32>,
    return
  }
  func.func @transform_0(%arg0: i32) -> (i32, i32) {
    %c0_i32 = arith.constant 0 : i32
    %c0_i32_0 = arith.constant 0 : i32
    return %arg0, %c0_i32 : i32, i32
  }
  func.func @transform_1(%arg0: i32) -> (i32, i32) {
    %c0_i32 = arith.constant 0 : i32
    %c0_i32_0 = arith.constant 0 : i32
    %c0_i32_1 = arith.constant 0 : i32
    return %c0_i32, %c0_i32_0 : i32, i32
  }
  func.func @transform_2(%arg0: i32) -> (i32, i32) {
    %c0_i32 = arith.constant 0 : i32
    %c0_i32_0 = arith.constant 0 : i32
    %c0_i32_1 = arith.constant 0 : i32
    return %c0_i32, %c0_i32_0 : i32, i32
  }
  func.func @transform_3(%arg0: i32) -> (i32, i32) {
    %c0_i32 = arith.constant 0 : i32
    %c0_i32_0 = arith.constant 0 : i32
    return %arg0, %c0_i32 : i32, i32
  }
}

module attributes {stable_mosaic.version = 11 : i64} {
  func.func @_linear_kernel(%arg0: i32, %arg1: memref<16x32xf32, #tpu.memory_space<vmem>>, %arg2: memref<32x64xbf16, #tpu.memory_space<vmem>>, %arg3: memref<1x64xf32, #tpu.memory_space<vmem>>, %arg4: memref<16x64xf32, #tpu.memory_space<vmem>>) attributes {dimension_semantics = [#tpu.dimension_semantics<parallel>], iteration_bounds = array<i64: 1>, scalar_prefetch = 0 : i64, scratch_operands = 0 : i64, tpu.core_type = #tpu.core_type<tc>, window_params = [{transform_indices = @transform_0, window_bounds = array<i64: 16, 32>}, {pipeline_mode = #tpu.pipeline_mode<synchronous>, transform_indices = @transform_1, window_bounds = array<i64: 32, 64>}, {pipeline_mode = #tpu.pipeline_mode<synchronous>, transform_indices = @transform_2, window_bounds = array<i64: 1, 64>}, {transform_indices = @transform_3, window_bounds = array<i64: 16, 64>}]} {
    %c0 = arith.constant 0 : index
    %c0_0 = arith.constant 0 : index
    %0 = vector.load %arg1[%c0, %c0_0] : memref<16x32xf32, #tpu.memory_space<vmem>>, vector<16x32xf32>
    %1 = arith.truncf %0 : vector<16x32xf32> to vector<16x32xbf16>
    %c0_1 = arith.constant 0 : index
    %c0_2 = arith.constant 0 : index
    %2 = vector.load %arg2[%c0_1, %c0_2] : memref<32x64xbf16, #tpu.memory_space<vmem>>, vector<32x64xbf16>
    %cst = arith.constant dense<0.000000e+00> : vector<16x64xf32>
    %3 = tpu.matmul %1, %2, %cst {dimension_numbers = #tpu.dot_dimension_numbers<[1], [0], [0], [1], [0, 0, 1, 1], [], []>} : vector<16x32xbf16>, vector<32x64xbf16>, vector<16x64xf32> -> vector<16x64xf32>
    %c0_3 = arith.constant 0 : index
    %c0_4 = arith.constant 0 : index
    %4 = vector.load %arg3[%c0_3, %c0_4] : memref<1x64xf32, #tpu.memory_space<vmem>>, vector<1x64xf32>
    %5 = vector.broadcast %4 : vector<1x64xf32> to vector<16x64xf32>
    %6 = arith.addf %3, %5 : vector<16x64xf32>
    %c0_5 = arith.constant 0 : index
    %c0_6 = arith.constant 0 : index
    %7 = vector.load %arg4[%c0_5, %c0_6] : memref<16x64xf32, #tpu.memory_space<vmem>>, vector<16x64xf32>
    tpu.vector_store %arg4[%c0_5, %c0_6], %6 {strides = array<i32>} : memref<16x64xf32, #tpu.memory_space<vmem>>, vector<16x64xf32>,
    return
  }
  func.func @transform_0(%arg0: i32) -> (i32, i32) {
    %c0_i32 = arith.constant 0 : i32
    %c0_i32_0 = arith.constant 0 : i32
    return %arg0, %c0_i32 : i32, i32
  }
  func.func @transform_1(%arg0: i32) -> (i32, i32) {
    %c0_i32 = arith.constant 0 : i32
    %c0_i32_0 = arith.constant 0 : i32
    %c0_i32_1 = arith.constant 0 : i32
    return %c0_i32, %c0_i32_0 : i32, i32
  }
  func.func @transform_2(%arg0: i32) -> (i32, i32) {
    %c0_i32 = arith.constant 0 : i32
    %c0_i32_0 = arith.constant 0 : i32
    %c0_i32_1 = arith.constant 0 : i32
    return %c0_i32, %c0_i32_0 : i32, i32
  }
  func.func @transform_3(%arg0: i32) -> (i32, i32) {
    %c0_i32 = arith.constant 0 : i32
    %c0_i32_0 = arith.constant 0 : i32
    return %arg0, %c0_i32 : i32, i32
  }
}

module attributes {stable_mosaic.version = 11 : i64} {
  func.func @_ffn_add_norm_kernel(%arg0: i32, %arg1: memref<16x32xf32, #tpu.memory_space<vmem>>, %arg2: memref<32x64xbf16, #tpu.memory_space<vmem>>, %arg3: memref<1x64xf32, #tpu.memory_space<vmem>>, %arg4: memref<64x32xbf16, #tpu.memory_space<vmem>>, %arg5: memref<1x32xf32, #tpu.memory_space<vmem>>, %arg6: memref<1x32xf32, #tpu.memory_space<vmem>>, %arg7: memref<1x32xf32, #tpu.memory_space<vmem>>, %arg8: memref<16x32xf32, #tpu.memory_space<vmem>>) attributes {dimension_semantics = [#tpu.dimension_semantics<parallel>], iteration_bounds = array<i64: 1>, scalar_prefetch = 0 : i64, scratch_operands = 0 : i64, tpu.core_type = #tpu.core_type<tc>, window_params = [{transform_indices = @transform_0, window_bounds = array<i64: 16, 32>}, {pipeline_mode = #tpu.pipeline_mode<synchronous>, transform_indices = @transform_1, window_bounds = array<i64: 32, 64>}, {pipeline_mode = #tpu.pipeline_mode<synchronous>, transform_indices = @transform_2, window_bounds = array<i64: 1, 64>}, {pipeline_mode = #tpu.pipeline_mode<synchronous>, transform_indices = @transform_3, window_bounds = array<i64: 64, 32>}, {pipeline_mode = #tpu.pipeline_mode<synchronous>, transform_indices = @transform_4, window_bounds = array<i64: 1, 32>}, {pipeline_mode = #tpu.pipeline_mode<synchronous>, transform_indices = @transform_5, window_bounds = array<i64: 1, 32>}, {pipeline_mode = #tpu.pipeline_mode<synchronous>, transform_indices = @transform_6, window_bounds = array<i64: 1, 32>}, {transform_indices = @transform_7, window_bounds = array<i64: 16, 32>}]} {
    %c0 = arith.constant 0 : index
    %c0_0 = arith.constant 0 : index
    %0 = vector.load %arg1[%c0, %c0_0] : memref<16x32xf32, #tpu.memory_space<vmem>>, vector<16x32xf32>
    %1 = arith.truncf %0 : vector<16x32xf32> to vector<16x32xbf16>
    %c0_1 = arith.constant 0 : index
    %c0_2 = arith.constant 0 : index
    %2 = vector.load %arg2[%c0_1, %c0_2] : memref<32x64xbf16, #tpu.memory_space<vmem>>, vector<32x64xbf16>
    %cst = arith.constant dense<0.000000e+00> : vector<16x64xf32>
    %3 = tpu.matmul %1, %2, %cst {dimension_numbers = #tpu.dot_dimension_numbers<[1], [0], [0], [1], [0, 0, 1, 1], [], []>} : vector<16x32xbf16>, vector<32x64xbf16>, vector<16x64xf32> -> vector<16x64xf32>
    %c0_3 = arith.constant 0 : index
    %c0_4 = arith.constant 0 : index
    %4 = vector.load %arg3[%c0_3, %c0_4] : memref<1x64xf32, #tpu.memory_space<vmem>>, vector<1x64xf32>
    %5 = vector.broadcast %4 : vector<1x64xf32> to vector<16x64xf32>
    %6 = arith.addf %3, %5 : vector<16x64xf32>
    %cst_5 = arith.constant 0.000000e+00 : f32
    %7 = vector.broadcast %cst_5 : f32 to vector<16x64xf32>
    %8 = arith.maximumf %6, %7 : vector<16x64xf32>
    %9 = arith.truncf %8 : vector<16x64xf32> to vector<16x64xbf16>
    %c0_6 = arith.constant 0 : index
    %c0_7 = arith.constant 0 : index
    %10 = vector.load %arg4[%c0_6, %c0_7] : memref<64x32xbf16, #tpu.memory_space<vmem>>, vector<64x32xbf16>
    %cst_8 = arith.constant dense<0.000000e+00> : vector<16x32xf32>
    %11 = tpu.matmul %9, %10, %cst_8 {dimension_numbers = #tpu.dot_dimension_numbers<[1], [0], [0], [1], [0, 0, 1, 1], [], []>} : vector<16x64xbf16>, vector<64x32xbf16>, vector<16x32xf32> -> vector<16x32xf32>
    %c0_9 = arith.constant 0 : index
    %c0_10 = arith.constant 0 : index
    %12 = vector.load %arg5[%c0_9, %c0_10] : memref<1x32xf32, #tpu.memory_space<vmem>>, vector<1x32xf32>
    %13 = vector.broadcast %12 : vector<1x32xf32> to vector<16x32xf32>
    %14 = arith.addf %11, %13 : vector<16x32xf32>
    %15 = arith.addf %0, %14 : vector<16x32xf32>
    %c0_11 = arith.constant 0 : index
    %c0_12 = arith.constant 0 : index
    %16 = vector.load %arg6[%c0_11, %c0_12] : memref<1x32xf32, #tpu.memory_space<vmem>>, vector<1x32xf32>
    %c0_13 = arith.constant 0 : index
    %c0_14 = arith.constant 0 : index
    %17 = vector.load %arg7[%c0_13, %c0_14] : memref<1x32xf32, #tpu.memory_space<vmem>>, vector<1x32xf32>
    %cst_15 = arith.constant dense<0.000000e+00> : vector<16xf32>
    %18 = vector.multi_reduction <add>, %15, %cst_15 [1] : vector<16x32xf32> to vector<16xf32>
    %19 = vector.shape_cast %18 : vector<16xf32> to vector<16x1xf32>
    %cst_16 = arith.constant 3.200000e+01 : f32
    %20 = vector.broadcast %cst_16 : f32 to vector<16x1xf32>
    %21 = arith.divf %19, %20 : vector<16x1xf32>
    %22 = vector.broadcast %21 : vector<16x1xf32> to vector<16x32xf32>
    %23 = arith.subf %15, %22 : vector<16x32xf32>
    %24 = arith.mulf %23, %23 : vector<16x32xf32>
    %cst_17 = arith.constant dense<0.000000e+00> : vector<16xf32>
    %25 = vector.multi_reduction <add>, %24, %cst_17 [1] : vector<16x32xf32> to vector<16xf32>
    %26 = vector.shape_cast %25 : vector<16xf32> to vector<16x1xf32>
    %cst_18 = arith.constant 3.200000e+01 : f32
    %27 = vector.broadcast %cst_18 : f32 to vector<16x1xf32>
    %28 = arith.divf %26, %27 : vector<16x1xf32>
    %29 = vector.broadcast %21 : vector<16x1xf32> to vector<16x32xf32>
    %30 = arith.subf %15, %29 : vector<16x32xf32>
    %cst_19 = arith.constant 9.99999974E-6 : f32
    %31 = vector.broadcast %cst_19 : f32 to vector<16x1xf32>
    %32 = arith.addf %28, %31 : vector<16x1xf32>
    %33 = math.rsqrt %32 : vector<16x1xf32>
    %34 = vector.broadcast %33 : vector<16x1xf32> to vector<16x32xf32>
    %35 = arith.mulf %30, %34 : vector<16x32xf32>
    %36 = vector.broadcast %16 : vector<1x32xf32> to vector<16x32xf32>
    %37 = arith.mulf %36, %35 : vector<16x32xf32>
    %38 = vector.broadcast %17 : vector<1x32xf32> to vector<16x32xf32>
    %39 = arith.addf %37, %38 : vector<16x32xf32>
    %c0_20 = arith.constant 0 : index
    %c0_21 = arith.constant 0 : index
    %40 = vector.load %arg8[%c0_20, %c0_21] : memref<16x32xf32, #tpu.memory_space<vmem>>, vector<16x32xf32>
    tpu.vector_store %arg8[%c0_20, %c0_21], %39 {strides = array<i32>} : memref<16x32xf32, #tpu.memory_space<vmem>>, vector<16x32xf32>,
    return
  }
  func.func @transform_0(%arg0: i32) -> (i32, i32) {
    %c0_i32 = arith.constant 0 : i32
    %c0_i32_0 = arith.constant 0 : i32
    return %arg0, %c0_i32 : i32, i32
  }
  func.func @transform_1(%arg0: i32) -> (i32, i32) {
    %c0_i32 = arith.constant 0 : i32
    %c0_i32_0 = arith.constant 0 : i32
    %c0_i32_1 = arith.constant 0 : i32
    return %c0_i32, %c0_i32_0 : i32, i32
  }
  func.func @transform_2(%arg0: i32) -> (i32, i32) {
    %c0_i32 = arith.constant 0 : i32
    %c0_i32_0 = arith.constant 0 : i32
    %c0_i32_1 = arith.constant 0 : i32
    return %c0_i32, %c0_i32_0 : i32, i32
  }
  func.func @transform_3(%arg0: i32) -> (i32, i32) {
    %c0_i32 = arith.constant 0 : i32
    %c0_i32_0 = arith.constant 0 : i32
    %c0_i32_1 = arith.constant 0 : i32
    return %c0_i32, %c0_i32_0 : i32, i32
  }
  func.func @transform_4(%arg0: i32) -> (i32, i32) {
    %c0_i32 = arith.constant 0 : i32
    %c0_i32_0 = arith.constant 0 : i32
    %c0_i32_1 = arith.constant 0 : i32
    return %c0_i32, %c0_i32_0 : i32, i32
  }
  func.func @transform_5(%arg0: i32) -> (i32, i32) {
    %c0_i32 = arith.constant 0 : i32
    %c0_i32_0 = arith.constant 0 : i32
    %c0_i32_1 = arith.constant 0 : i32
    return %c0_i32, %c0_i32_0 : i32, i32
  }
  func.func @transform_6(%arg0: i32) -> (i32, i32) {
    %c0_i32 = arith.constant 0 : i32
    %c0_i32_0 = arith.constant 0 : i32
    %c0_i32_1 = arith.constant 0 : i32
    return %c0_i32, %c0_i32_0 : i32, i32
  }
  func.func @transform_7(%arg0: i32) -> (i32, i32) {
    %c0_i32 = arith.constant 0 : i32
    %c0_i32_0 = arith.constant 0 : i32
    return %arg0, %c0_i32 : i32, i32
  }
}

module attributes {stable_mosaic.version = 11 : i64} {
  func.func @_attention_kernel(%arg0: i32, %arg1: memref<1x4x8x8xf32, #tpu.memory_space<vmem>>, %arg2: memref<1x4x8x8xf32, #tpu.memory_space<vmem>>, %arg3: memref<1x4x8x8xf32, #tpu.memory_space<vmem>>, %arg4: memref<1x4x8x8xf32, #tpu.memory_space<vmem>>) attributes {dimension_semantics = [#tpu.dimension_semantics<parallel>], iteration_bounds = array<i64: 2>, scalar_prefetch = 0 : i64, scratch_operands = 0 : i64, tpu.core_type = #tpu.core_type<tc>, window_params = [{transform_indices = @transform_0, window_bounds = array<i64: 1, 4, 8, 8>}, {transform_indices = @transform_1, window_bounds = array<i64: 1, 4, 8, 8>}, {transform_indices = @transform_2, window_bounds = array<i64: 1, 4, 8, 8>}, {transform_indices = @transform_3, window_bounds = array<i64: 1, 4, 8, 8>}]} {
    %c0 = arith.constant 0 : index
    %c0_0 = arith.constant 0 : index
    %c0_1 = arith.constant 0 : index
    %c0_2 = arith.constant 0 : index
    %0 = vector.load %arg1[%c0, %c0_0, %c0_1, %c0_2] : memref<1x4x8x8xf32, #tpu.memory_space<vmem>>, vector<1x4x8x8xf32>
    %1 = vector.shape_cast %0 : vector<1x4x8x8xf32> to vector<4x8x8xf32>
    %cst = arith.constant 0.353553385 : f32
    %2 = vector.broadcast %cst : f32 to vector<4x8x8xf32>
    %3 = arith.mulf %1, %2 : vector<4x8x8xf32>
    %4 = arith.truncf %3 : vector<4x8x8xf32> to vector<4x8x8xbf16>
    %c0_3 = arith.constant 0 : index
    %c0_4 = arith.constant 0 : index
    %c0_5 = arith.constant 0 : index
    %c0_6 = arith.constant 0 : index
    %5 = vector.load %arg2[%c0_3, %c0_4, %c0_5, %c0_6] : memref<1x4x8x8xf32, #tpu.memory_space<vmem>>, vector<1x4x8x8xf32>
    %6 = vector.shape_cast %5 : vector<1x4x8x8xf32> to vector<4x8x8xf32>
    %7 = arith.truncf %6 : vector<4x8x8xf32> to vector<4x8x8xbf16>
    %c0_7 = arith.constant 0 : index
    %c0_8 = arith.constant 0 : index
    %c0_9 = arith.constant 0 : index
    %c0_10 = arith.constant 0 : index
    %8 = vector.load %arg3[%c0_7, %c0_8, %c0_9, %c0_10] : memref<1x4x8x8xf32, #tpu.memory_space<vmem>>, vector<1x4x8x8xf32>
    %9 = vector.shape_cast %8 : vector<1x4x8x8xf32> to vector<4x8x8xf32>
    %10 = arith.truncf %9 : vector<4x8x8xf32> to vector<4x8x8xbf16>
    "tpu.trace_start"() <{level = 10 : i32, message = "hqd,hkd->hqk"}> : () -> ()
    %cst_11 = arith.constant dense<0.000000e+00> : vector<4x8x8xf32>
    %11 = tpu.matmul %4, %7, %cst_11 {dimension_numbers = #tpu.dot_dimension_numbers<[2], [2], [1], [1], [0, 0, 0, 1, 1, 1], [0], [0]>} : vector<4x8x8xbf16>, vector<4x8x8xbf16>, vector<4x8x8xf32> -> vector<4x8x8xf32>
    "tpu.trace_stop"() : () -> ()
    %cst_12 = arith.constant dense<0xFF800000> : vector<4x8xf32>
    %12 = vector.multi_reduction <maximumf>, %11, %cst_12 [2] : vector<4x8x8xf32> to vector<4x8xf32>
    %13 = vector.shape_cast %12 : vector<4x8xf32> to vector<4x8x1xf32>
    %14 = vector.broadcast %13 : vector<4x8x1xf32> to vector<4x8x8xf32>
    %15 = arith.subf %11, %14 : vector<4x8x8xf32>
    %16 = math.exp %15 : vector<4x8x8xf32>
    %cst_13 = arith.constant dense<0.000000e+00> : vector<4x8xf32>
    %17 = vector.multi_reduction <add>, %16, %cst_13 [2] : vector<4x8x8xf32> to vector<4x8xf32>
    %18 = vector.shape_cast %17 : vector<4x8xf32> to vector<4x8x1xf32>
    %19 = tpu.reciprocal %18 {approx = true} : vector<4x8x1xf32> -> vector<4x8x1xf32>
    %20 = vector.broadcast %19 : vector<4x8x1xf32> to vector<4x8x8xf32>
    %21 = arith.mulf %16, %20 : vector<4x8x8xf32>
    %22 = arith.truncf %21 : vector<4x8x8xf32> to vector<4x8x8xbf16>
    "tpu.trace_start"() <{level = 10 : i32, message = "hqk,hkd->hqd"}> : () -> ()
    %cst_14 = arith.constant dense<0.000000e+00> : vector<4x8x8xf32>
    %23 = tpu.matmul %22, %10, %cst_14 {dimension_numbers = #tpu.dot_dimension_numbers<[2], [1], [1], [2], [0, 0, 0, 1, 1, 2], [0], [0]>} : vector<4x8x8xbf16>, vector<4x8x8xbf16>, vector<4x8x8xf32> -> vector<4x8x8xf32>
    "tpu.trace_stop"() : () -> ()
    %c0_15 = arith.constant 0 : index
    %c0_16 = arith.constant 0 : index
    %c0_17 = arith.constant 0 : index
    %c0_18 = arith.constant 0 : index
    %24 = vector.load %arg4[%c0_15, %c0_16, %c0_17, %c0_18] : memref<1x4x8x8xf32, #tpu.memory_space<vmem>>, vector<1x4x8x8xf32>
    %25 = vector.shape_cast %24 : vector<1x4x8x8xf32> to vector<4x8x8xf32>
    %26 = vector.shape_cast %23 : vector<4x8x8xf32> to vector<1x4x8x8xf32>
    tpu.vector_store %arg4[%c0_15, %c0_16, %c0_17, %c0_18], %26 {strides = array<i32>} : memref<1x4x8x8xf32, #tpu.memory_space<vmem>>, vector<1x4x8x8xf32>,
    return
  }
  func.func @transform_0(%arg0: i32) -> (i32, i32, i32, i32) {
    %c0_i32 = arith.constant 0 : i32
    %c0_i32_0 = arith.constant 0 : i32
    %c0_i32_1 = arith.constant 0 : i32
    %c0_i32_2 = arith.constant 0 : i32
    return %arg0, %c0_i32, %c0_i32_0, %c0_i32_1 : i32, i32, i32, i32
  }
  func.func @transform_1(%arg0: i32) -> (i32, i32, i32, i32) {
    %c0_i32 = arith.constant 0 : i32
    %c0_i32_0 = arith.constant 0 : i32
    %c0_i32_1 = arith.constant 0 : i32
    %c0_i32_2 = arith.constant 0 : i32
    return %arg0, %c0_i32, %c0_i32_0, %c0_i32_1 : i32, i32, i32, i32
  }
  func.func @transform_2(%arg0: i32) -> (i32, i32, i32, i32) {
    %c0_i32 = arith.constant 0 : i32
    %c0_i32_0 = arith.constant 0 : i32
    %c0_i32_1 = arith.constant 0 : i32
    %c0_i32_2 = arith.constant 0 : i32
    return %arg0, %c0_i32, %c0_i32_0, %c0_i32_1 : i32, i32, i32, i32
  }
  func.func @transform_3(%arg0: i32) -> (i32, i32, i32, i32) {
    %c0_i32 = arith.constant 0 : i32
    %c0_i32_0 = arith.constant 0 : i32
    %c0_i32_1 = arith.constant 0 : i32
    %c0_i32_2 = arith.constant 0 : i32
    return %arg0, %c0_i32, %c0_i32_0, %c0_i32_1 : i32, i32, i32, i32
  }
}

</mosaic_0001>

<llo_original>
// kernel: decoder_forward.16
$region0: #{decoder_forward.16}
  #allocation0 [shape = 'u32[]', space=smem, size = 0x4, offset = 0x4, fixed_abs, tag = 'smem constant byte address 0x4 - core index']
  #allocation1 [shape = 'u32[144,128]{1,0:T(1,128)}', space=vmem, size = 0x12000, scoped, tag = 'internal scratch']
  %s0 = inlined_call_operand.vmem [shape: f32[16,32], index: 0, kind: input, shape index: {}]
  %s1 = inlined_call_operand.vmem [shape: bf16[32,96], index: 1, kind: input, shape index: {}]
  %s2 = inlined_call_operand.vmem [shape: f32[1,96], index: 2, kind: input, shape index: {}]
  %s3 = inlined_call_operand.vmem [shape: f32[16,96], index: 3, kind: output, shape index: {}]
  %s4 = sld [smem:[#allocation0]]
  $region22: #{decoder_forward.16} parent=0
    _
  %s6 = ssub.s32 1, %s4
  %s7 = scalar_select 0, %s6, %s4
  // Predicated region
  $region2: #{decoder_forward.16} parent=0 // pred_check
    _
  $region3: #{decoder_forward.16} parent=0 // pred_check_branch
    %9 = sbr.rel (0) target = $region5
  $region4: #{decoder_forward.16} parent=0 // pred_region
    _
  $region5: #{decoder_forward.16} parent=0 // pred_fallthru
    _
  // Predicated region
  $region6: #{decoder_forward.16} parent=0 // pred_check
    _
  $region7: #{decoder_forward.16} parent=0 // pred_check_branch
    %11 = sbr.rel (0) target = $region9
  $region8: #{decoder_forward.16} parent=0 // pred_region
    _
  $region9: #{decoder_forward.16} parent=0 // pred_fallthru
    _
  // Predicated region
  $region10: #{decoder_forward.16} parent=0 // pred_check
    _
  $region11: #{decoder_forward.16} parent=0 // pred_check_branch
    %13 = sbr.rel (0) target = $region13
  $region12: #{decoder_forward.16} parent=0 // pred_region
    _
  $region13: #{decoder_forward.16} parent=0 // pred_fallthru
    _
  %v15 = vld [vmem:[%s0] sm:$0xff]
  %v16 = vld [vmem:[%s0 + $0x8] sm:$0xff]
  %v17 = vpack.c.bf16 %v16, %v15
  %v18 = vld [vmem:[%s1] sm:$0xf]
  %v19 = vld [vmem:[%s1 + $0x4] sm:$0xf]
  %v20 = vld [vmem:[%s1 + $0x8] sm:$0xf]
  %v21 = vld [vmem:[%s1 + $0xc] sm:$0xf]
  %v22 = vld [vmem:[%s2] sm:$0x1]
  %v24 = vlaneseq
  %v25 = vshrl.u32 %v24, 7
  %v26 = vsub.s32 0, %v25
  %v27 = vrot.slane %v22, %v26
  %v33 = vunpack.c.l.b16 %v18
  %v34 = vunpack.c.l.b16 %v19
  %v35 = vunpack.c.l.b16 %v20
  %v36 = vunpack.c.l.b16 %v21
  %v37 = vpack.c.b16 %v34, %v33
  %v38 = vpack.c.b16 %v36, %v35
  %vm41 = vcmask 261120
  %v43 = vsel %vm41, %v17, 0
  %45 = vmatprep.subr.bf16.mxu0 0
  %46 = vmatpush1.bf16.msra.mxu0 %v37
  %47 = vmatprep.subr.bf16.mxu0 0
  %48 = vmatpush1.bf16.msra.mxu0 %v38
  %49 = vmatprep.subr.bf16.mxu0 0
  %50 = vmatpush1.bf16.msra.mxu0 0
  %51 = vmatprep.subr.bf16.mxu0 0
  %52 = vmatpush1.bf16.msra.mxu0 0
  %53 = vmatprep.subr.bf16.mxu0 0
  %54 = vmatpush1.bf16.msra.mxu0 0
  %55 = vmatprep.subr.bf16.mxu0 0
  %56 = vmatpush1.bf16.msra.mxu0 0
  %57 = vmatprep.subr.bf16.mxu0 0
  %58 = vmatpush1.bf16.msra.mxu0 0
  %59 = vmatprep.subr.bf16.mxu0 0
  %60 = vmatpush1.bf16.msra.mxu0 0
  %61 = vmatprep.subr.bf16.mxu0 0
  %62 = vmatpush1.bf16.msra.mxu0 0
  %63 = vmatprep.subr.bf16.mxu0 0
  %64 = vmatpush1.bf16.msra.mxu0 0
  %65 = vmatprep.subr.bf16.mxu0 0
  %66 = vmatpush1.bf16.msra.mxu0 0
  %67 = vmatprep.subr.bf16.mxu0 0
  %68 = vmatpush1.bf16.msra.mxu0 0
  %69 = vmatprep.subr.bf16.mxu0 0
  %70 = vmatpush1.bf16.msra.mxu0 0
  %71 = vmatprep.subr.bf16.mxu0 0
  %72 = vmatpush1.bf16.msra.mxu0 0
  %73 = vmatprep.subr.bf16.mxu0 0
  %74 = vmatpush1.bf16.msra.mxu0 0
  %75 = vmatprep.subr.bf16.mxu0 0
  %76 = vmatpush1.bf16.msra.mxu0 0
  %77 = vmatprep.mubr.bf16.mxu0 0
  %78 = vmatmul.mubr.bf16.gmra.mrb[0].mxu0 %v43
  %v79 = vpop.f32.mrb[0].mxu0
  %v80 = vadd.f32 %v27, %v79
  %v81 = vpop.f32.mrb[0].mxu0
  %v82 = vpop.f32.mrb[0].mxu0
  %v83 = vadd.f32 %v27, %v82
  %v84 = vpop.f32.mrb[0].mxu0
  %85 = vdwg.mxu0
  %vm86 = vcmask 785408
  %87 = vst.msk [vmem:[%s3] sm:$0xff] %vm86, %v80
  %88 = vst.msk [vmem:[%s3 + $0x8] sm:$0xff] %vm86, %v83
  // Predicated region
  $region14: #{decoder_forward.16} parent=0 // pred_check
    _
  $region15: #{decoder_forward.16} parent=0 // pred_check_branch
    %90 = sbr.rel (0) target = $region17
  $region16: #{decoder_forward.16} parent=0 // pred_region
    _
  $region17: #{decoder_forward.16} parent=0 // pred_fallthru
    _
  // Predicated region
  $region18: #{decoder_forward.16} parent=0 // pred_check
    _
  $region19: #{decoder_forward.16} parent=0 // pred_check_branch
    %92 = sbr.rel (0) target = $region21
  $region20: #{decoder_forward.16} parent=0 // pred_region
    _
  $region21: #{decoder_forward.16} parent=0 // pred_fallthru
    _

// kernel: decoder_forward.19
$region0: #{decoder_forward.19}
  #allocation0 [shape = 'u32[]', space=smem, size = 0x4, offset = 0x4, fixed_abs, tag = 'smem constant byte address 0x4 - core index']
  #allocation1 [shape = 'u32[144,128]{1,0:T(1,128)}', space=vmem, size = 0x12000, scoped, tag = 'internal scratch']
  %s0 = inlined_call_operand.vmem [shape: f32[16,32], index: 0, kind: input, shape index: {}]
  %s1 = inlined_call_operand.vmem [shape: bf16[32,32], index: 1, kind: input, shape index: {}]
  %s2 = inlined_call_operand.vmem [shape: f32[1,32], index: 2, kind: input, shape index: {}]
  %s3 = inlined_call_operand.vmem [shape: f32[16,32], index: 3, kind: output, shape index: {}]
  %s4 = sld [smem:[#allocation0]]
  $region22: #{decoder_forward.19} parent=0
    _
  %s6 = ssub.s32 1, %s4
  %s7 = scalar_select 0, %s6, %s4
  // Predicated region
  $region2: #{decoder_forward.19} parent=0 // pred_check
    _
  $region3: #{decoder_forward.19} parent=0 // pred_check_branch
    %9 = sbr.rel (0) target = $region5
  $region4: #{decoder_forward.19} parent=0 // pred_region
    _
  $region5: #{decoder_forward.19} parent=0 // pred_fallthru
    _
  // Predicated region
  $region6: #{decoder_forward.19} parent=0 // pred_check
    _
  $region7: #{decoder_forward.19} parent=0 // pred_check_branch
    %11 = sbr.rel (0) target = $region9
  $region8: #{decoder_forward.19} parent=0 // pred_region
    _
  $region9: #{decoder_forward.19} parent=0 // pred_fallthru
    _
  // Predicated region
  $region10: #{decoder_forward.19} parent=0 // pred_check
    _
  $region11: #{decoder_forward.19} parent=0 // pred_check_branch
    %13 = sbr.rel (0) target = $region13
  $region12: #{decoder_forward.19} parent=0 // pred_region
    _
  $region13: #{decoder_forward.19} parent=0 // pred_fallthru
    _
  %v15 = vld [vmem:[%s0] sm:$0xff]
  %v16 = vld [vmem:[%s0 + $0x8] sm:$0xff]
  %v17 = vpack.c.bf16 %v16, %v15
  %v18 = vld [vmem:[%s1] sm:$0xf]
  %v19 = vld [vmem:[%s1 + $0x4] sm:$0xf]
  %v20 = vld [vmem:[%s1 + $0x8] sm:$0xf]
  %v21 = vld [vmem:[%s1 + $0xc] sm:$0xf]
  %v22 = vld [vmem:[%s2] sm:$0x1]
  %v24 = vlaneseq
  %v25 = vshrl.u32 %v24, 7
  %v26 = vsub.s32 0, %v25
  %v27 = vrot.slane %v22, %v26
  %v33 = vunpack.c.l.b16 %v18
  %v34 = vunpack.c.l.b16 %v19
  %v35 = vunpack.c.l.b16 %v20
  %v36 = vunpack.c.l.b16 %v21
  %v37 = vpack.c.b16 %v34, %v33
  %v38 = vpack.c.b16 %v36, %v35
  %vm41 = vcmask 261120
  %v43 = vsel %vm41, %v17, 0
  %45 = vmatprep.subr.bf16.mxu0 0
  %46 = vmatpush1.bf16.msra.mxu0 %v37
  %47 = vmatprep.subr.bf16.mxu0 0
  %48 = vmatpush1.bf16.msra.mxu0 %v38
  %49 = vmatprep.subr.bf16.mxu0 0
  %50 = vmatpush1.bf16.msra.mxu0 0
  %51 = vmatprep.subr.bf16.mxu0 0
  %52 = vmatpush1.bf16.msra.mxu0 0
  %53 = vmatprep.subr.bf16.mxu0 0
  %54 = vmatpush1.bf16.msra.mxu0 0
  %55 = vmatprep.subr.bf16.mxu0 0
  %56 = vmatpush1.bf16.msra.mxu0 0
  %57 = vmatprep.subr.bf16.mxu0 0
  %58 = vmatpush1.bf16.msra.mxu0 0
  %59 = vmatprep.subr.bf16.mxu0 0
  %60 = vmatpush1.bf16.msra.mxu0 0
  %61 = vmatprep.subr.bf16.mxu0 0
  %62 = vmatpush1.bf16.msra.mxu0 0
  %63 = vmatprep.subr.bf16.mxu0 0
  %64 = vmatpush1.bf16.msra.mxu0 0
  %65 = vmatprep.subr.bf16.mxu0 0
  %66 = vmatpush1.bf16.msra.mxu0 0
  %67 = vmatprep.subr.bf16.mxu0 0
  %68 = vmatpush1.bf16.msra.mxu0 0
  %69 = vmatprep.subr.bf16.mxu0 0
  %70 = vmatpush1.bf16.msra.mxu0 0
  %71 = vmatprep.subr.bf16.mxu0 0
  %72 = vmatpush1.bf16.msra.mxu0 0
  %73 = vmatprep.subr.bf16.mxu0 0
  %74 = vmatpush1.bf16.msra.mxu0 0
  %75 = vmatprep.subr.bf16.mxu0 0
  %76 = vmatpush1.bf16.msra.mxu0 0
  %77 = vmatprep.mubr.bf16.mxu0 0
  %78 = vmatmul.mubr.bf16.gmra.mrb[0].mxu0 %v43
  %v79 = vpop.f32.mrb[0].mxu0
  %v80 = vadd.f32 %v27, %v79
  %v81 = vpop.f32.mrb[0].mxu0
  %v82 = vpop.f32.mrb[0].mxu0
  %v83 = vadd.f32 %v27, %v82
  %v84 = vpop.f32.mrb[0].mxu0
  %85 = vdwg.mxu0
  %86 = vst.msk [vmem:[%s3] sm:$0xff] %vm41, %v80
  %87 = vst.msk [vmem:[%s3 + $0x8] sm:$0xff] %vm41, %v83
  // Predicated region
  $region14: #{decoder_forward.19} parent=0 // pred_check
    _
  $region15: #{decoder_forward.19} parent=0 // pred_check_branch
    %89 = sbr.rel (0) target = $region17
  $region16: #{decoder_forward.19} parent=0 // pred_region
    _
  $region17: #{decoder_forward.19} parent=0 // pred_fallthru
    _
  // Predicated region
  $region18: #{decoder_forward.19} parent=0 // pred_check
    _
  $region19: #{decoder_forward.19} parent=0 // pred_check_branch
    %91 = sbr.rel (0) target = $region21
  $region20: #{decoder_forward.19} parent=0 // pred_region
    _
  $region21: #{decoder_forward.19} parent=0 // pred_fallthru
    _

// kernel: decoder_forward.18
$region0: #{decoder_forward.18}
  #allocation0 [shape = 'u32[]', space=smem, size = 0x4, offset = 0x4, fixed_abs, tag = 'smem constant byte address 0x4 - core index']
  #allocation1 [shape = 'u32[144,128]{1,0:T(1,128)}', space=vmem, size = 0x12000, scoped, tag = 'internal scratch']
  %s0 = inlined_call_operand.vmem [shape: f32[16,32], index: 0, kind: input, shape index: {}]
  %s1 = inlined_call_operand.vmem [shape: f32[16,32], index: 1, kind: input, shape index: {}, may-alias: {1,6}]
  %s2 = inlined_call_operand.vmem [shape: bf16[32,32], index: 2, kind: input, shape index: {}]
  %s3 = inlined_call_operand.vmem [shape: f32[1,32], index: 3, kind: input, shape index: {}]
  %s4 = inlined_call_operand.vmem [shape: f32[1,32], index: 4, kind: input, shape index: {}]
  %s5 = inlined_call_operand.vmem [shape: f32[1,32], index: 5, kind: input, shape index: {}]
  %s6 = inlined_call_operand.vmem [shape: f32[16,32], index: 6, kind: output, shape index: {}, may-alias: {1,6}]
  %s7 = sld [smem:[#allocation0]]
  $region34: #{decoder_forward.18} parent=0
    _
  %s9 = ssub.s32 1, %s7
  %s10 = scalar_select 0, %s9, %s7
  // Predicated region
  $region2: #{decoder_forward.18} parent=0 // pred_check
    _
  $region3: #{decoder_forward.18} parent=0 // pred_check_branch
    %12 = sbr.rel (0) target = $region5
  $region4: #{decoder_forward.18} parent=0 // pred_region
    _
  $region5: #{decoder_forward.18} parent=0 // pred_fallthru
    _
  // Predicated region
  $region6: #{decoder_forward.18} parent=0 // pred_check
    _
  $region7: #{decoder_forward.18} parent=0 // pred_check_branch
    %14 = sbr.rel (0) target = $region9
  $region8: #{decoder_forward.18} parent=0 // pred_region
    _
  $region9: #{decoder_forward.18} parent=0 // pred_fallthru
    _
  // Predicated region
  $region10: #{decoder_forward.18} parent=0 // pred_check
    _
  $region11: #{decoder_forward.18} parent=0 // pred_check_branch
    %16 = sbr.rel (0) target = $region13
  $region12: #{decoder_forward.18} parent=0 // pred_region
    _
  $region13: #{decoder_forward.18} parent=0 // pred_fallthru
    _
  // Predicated region
  $region14: #{decoder_forward.18} parent=0 // pred_check
    _
  $region15: #{decoder_forward.18} parent=0 // pred_check_branch
    %18 = sbr.rel (0) target = $region17
  $region16: #{decoder_forward.18} parent=0 // pred_region
    _
  $region17: #{decoder_forward.18} parent=0 // pred_fallthru
    _
  // Predicated region
  $region18: #{decoder_forward.18} parent=0 // pred_check
    _
  $region19: #{decoder_forward.18} parent=0 // pred_check_branch
    %20 = sbr.rel (0) target = $region21
  $region20: #{decoder_forward.18} parent=0 // pred_region
    _
  $region21: #{decoder_forward.18} parent=0 // pred_fallthru
    _
  // Predicated region
  $region22: #{decoder_forward.18} parent=0 // pred_check
    _
  $region23: #{decoder_forward.18} parent=0 // pred_check_branch
    %22 = sbr.rel (0) target = $region25
  $region24: #{decoder_forward.18} parent=0 // pred_region
    _
  $region25: #{decoder_forward.18} parent=0 // pred_fallthru
    _
  %v24 = vld [vmem:[%s0] sm:$0xff]
  %v25 = vld [vmem:[%s0 + $0x8] sm:$0xff]
  %v26 = vpack.c.bf16 %v25, %v24
  %v27 = vld [vmem:[%s2] sm:$0xf]
  %v28 = vld [vmem:[%s2 + $0x4] sm:$0xf]
  %v29 = vld [vmem:[%s2 + $0x8] sm:$0xf]
  %v30 = vld [vmem:[%s2 + $0xc] sm:$0xf]
  %v31 = vld [vmem:[%s3] sm:$0x1]
  %v33 = vlaneseq
  %v34 = vshrl.u32 %v33, 7
  %v35 = vsub.s32 0, %v34
  %v36 = vrot.slane %v31, %v35
  %v42 = vunpack.c.l.b16 %v27
  %v43 = vunpack.c.l.b16 %v28
  %v44 = vunpack.c.l.b16 %v29
  %v45 = vunpack.c.l.b16 %v30
  %v46 = vpack.c.b16 %v43, %v42
  %v47 = vpack.c.b16 %v45, %v44
  %vm50 = vcmask 261120
  %v52 = vsel %vm50, %v26, 0
  %54 = vmatprep.subr.bf16.mxu0 0
  %55 = vmatpush1.bf16.msra.mxu0 %v46
  %56 = vmatprep.subr.bf16.mxu0 0
  %57 = vmatpush1.bf16.msra.mxu0 %v47
  %58 = vmatprep.subr.bf16.mxu0 0
  %59 = vmatpush1.bf16.msra.mxu0 0
  %60 = vmatprep.subr.bf16.mxu0 0
  %61 = vmatpush1.bf16.msra.mxu0 0
  %62 = vmatprep.subr.bf16.mxu0 0
  %63 = vmatpush1.bf16.msra.mxu0 0
  %64 = vmatprep.subr.bf16.mxu0 0
  %65 = vmatpush1.bf16.msra.mxu0 0
  %66 = vmatprep.subr.bf16.mxu0 0
  %67 = vmatpush1.bf16.msra.mxu0 0
  %68 = vmatprep.subr.bf16.mxu0 0
  %69 = vmatpush1.bf16.msra.mxu0 0
  %70 = vmatprep.subr.bf16.mxu0 0
  %71 = vmatpush1.bf16.msra.mxu0 0
  %72 = vmatprep.subr.bf16.mxu0 0
  %73 = vmatpush1.bf16.msra.mxu0 0
  %74 = vmatprep.subr.bf16.mxu0 0
  %75 = vmatpush1.bf16.msra.mxu0 0
  %76 = vmatprep.subr.bf16.mxu0 0
  %77 = vmatpush1.bf16.msra.mxu0 0
  %78 = vmatprep.subr.bf16.mxu0 0
  %79 = vmatpush1.bf16.msra.mxu0 0
  %80 = vmatprep.subr.bf16.mxu0 0
  %81 = vmatpush1.bf16.msra.mxu0 0
  %82 = vmatprep.subr.bf16.mxu0 0
  %83 = vmatpush1.bf16.msra.mxu0 0
  %84 = vmatprep.subr.bf16.mxu0 0
  %85 = vmatpush1.bf16.msra.mxu0 0
  %86 = vmatprep.mubr.bf16.mxu0 0
  %87 = vmatmul.mubr.bf16.gmra.mrb[0].mxu0 %v52
  %v88 = vpop.f32.mrb[0].mxu0
  %v89 = vadd.f32 %v36, %v88
  %v90 = vpop.f32.mrb[0].mxu0
  %v91 = vpop.f32.mrb[0].mxu0
  %v92 = vadd.f32 %v36, %v91
  %v93 = vpop.f32.mrb[0].mxu0
  %94 = vdwg.mxu0
  %v95 = vld [vmem:[%s1] sm:$0xff]
  %v96 = vld [vmem:[%s1 + $0x8] sm:$0xff]
  %v97 = vadd.f32 %v95, %v89
  %v98 = vadd.f32 %v96, %v92
  %v99 = vld [vmem:[%s4] sm:$0x1]
  %v100 = vld [vmem:[%s5] sm:$0x1]
  %v101 = vsel %vm50, %v97, 0.0
  %102 = vadd.xlane.f32.xlu0 %v101
  %v103 = vpop.xlane.xlu0 %102
  %v104 = vsel %vm50, %v98, 0.0
  %105 = vadd.xlane.f32.xlu0 %v104
  %v106 = vpop.xlane.xlu0 %105
  %v107 = vrcp.pop 32.0
  %v108 = vmul.f32 %v103, %v107
  %v109 = vmul.f32 %v106, %v107
  %v110 = vsub.f32 %v97, %v108
  %v111 = vsub.f32 %v98, %v109
  %v112 = vmul.f32 %v110, %v110
  %v113 = vmul.f32 %v111, %v111
  %v114 = vsel %vm50, %v112, 0.0
  %115 = vadd.xlane.f32.xlu0 %v114
  %v116 = vpop.xlane.xlu0 %115
  %v117 = vsel %vm50, %v113, 0.0
  %118 = vadd.xlane.f32.xlu0 %v117
  %v119 = vpop.xlane.xlu0 %118
  %v120 = vmul.f32 %v116, %v107
  %v121 = vmul.f32 %v119, %v107
  %v122 = vadd.f32 %v120, 1e-05
  %v123 = vadd.f32 %v121, 1e-05
  %v124 = vrsqrt.pop %v122
  %v125 = vrsqrt.pop %v123
  %v126 = vmul.f32 %v110, %v124
  %v127 = vmul.f32 %v111, %v125
  %v129 = vlaneseq
  %v130 = vshrl.u32 %v129, 7
  %v131 = vsub.s32 0, %v130
  %v132 = vrot.slane %v99, %v131
  %v134 = vmul.f32 %v132, %v126
  %v135 = vmul.f32 %v132, %v127
  %v137 = vlaneseq
  %v138 = vshrl.u32 %v137, 7
  %v139 = vsub.s32 0, %v138
  %v140 = vrot.slane %v100, %v139
  %v142 = vadd.f32 %v134, %v140
  %v143 = vadd.f32 %v135, %v140
  %144 = vst.msk [vmem:[%s6] sm:$0xff] %vm50, %v142
  %145 = vst.msk [vmem:[%s6 + $0x8] sm:$0xff] %vm50, %v143
  // Predicated region
  $region26: #{decoder_forward.18} parent=0 // pred_check
    _
  $region27: #{decoder_forward.18} parent=0 // pred_check_branch
    %147 = sbr.rel (0) target = $region29
  $region28: #{decoder_forward.18} parent=0 // pred_region
    _
  $region29: #{decoder_forward.18} parent=0 // pred_fallthru
    _
  // Predicated region
  $region30: #{decoder_forward.18} parent=0 // pred_check
    _
  $region31: #{decoder_forward.18} parent=0 // pred_check_branch
    %149 = sbr.rel (0) target = $region33
  $region32: #{decoder_forward.18} parent=0 // pred_region
    _
  $region33: #{decoder_forward.18} parent=0 // pred_fallthru
    _

// kernel: decoder_forward.17
$region0: #{decoder_forward.17}
  #allocation0 [shape = 'u32[]', space=smem, size = 0x4, offset = 0x4, fixed_abs, tag = 'smem constant byte address 0x4 - core index']
  #allocation1 [shape = 'u32[144,128]{1,0:T(1,128)}', space=vmem, size = 0x12000, scoped, tag = 'internal scratch']
  %s0 = inlined_call_operand.vmem [shape: f32[2,4,8,8], index: 0, kind: input, shape index: {}]
  %s1 = inlined_call_operand.vmem [shape: f32[2,4,8,8], index: 1, kind: input, shape index: {}]
  %s2 = inlined_call_operand.vmem [shape: f32[2,4,8,8], index: 2, kind: input, shape index: {}]
  %s3 = inlined_call_operand.vmem [shape: f32[8,8], index: 3, kind: input, shape index: {}]
  %s4 = inlined_call_operand.vmem [shape: f32[2,4,8,8], index: 4, kind: output, shape index: {}]
  %s5 = sld [smem:[#allocation0]]
  $region49: #{decoder_forward.17} parent=0
    _
  %s7 = ssub.s32 1, %s5
  %s8 = scalar_select 0, %s7, %s5
  loop: start=0, step=1, limit=4
  $region2: #{decoder_forward.17} parent=0 // loop_pre_header
    _
  $region3: #{decoder_forward.17} parent=0 // loop_header
    %s10 = sphi 0, %s14
    %p11 = scmp.ge.s32.totalorder %s10, 4
    %s20 = sphi 0, %s22
    %s23 = sphi 0, %s20
    %s24 = sphi 0, %s23
    %s40 = sphi 0, %s24
    %s46 = sphi 0, %s48
    %s49 = sphi 0, %s46
    %s50 = sphi 0, %s49
    %s66 = sphi 0, %s50
    %s72 = sphi 0, %s74
    %s75 = sphi 0, %s72
    %s76 = sphi 0, %s75
    %s92 = sphi 0, %s76
    %s96 = sphi 0, %s96
    %s98 = sphi 0, %s96
    %s99 = sphi 0, %s98
    %s113 = sphi 0, %s99
    %s119 = sphi 0, %s121
    %s122 = sphi 0, %s119
    %s123 = sphi 0, %s122
    %s139 = sphi 0, %s123
  $region4: #{decoder_forward.17} parent=0 // loop_header_branch
    %13 = sbr.rel (%p11) target = $region8
  $region5: #{decoder_forward.17} parent=0 // loop_body
    %s15 = ssub.s32 %s10, 1
    %s16 = ssub.s32 %s10, 2
    %s17 = sadd.s32 %s10, 1
    %s18 = ssub.s32 %s10, %s17
    %p19 = scmp.eq.s32.totalorder %s18, 0
    %s21 = sadd.s32 %s20, 1
    %s22 = scalar_select %p19, %s20, %s21
    %p25 = pneg %p19
    %p26 = scmp.eq.s32.totalorder %s10, 1
    %p27 = por %p25, %p26
    %p28 = scmp.ne.s32.totalorder %s20, %s23
    %p29 = scmp.eq.s32.totalorder %s10, 0
    %p30 = por %p28, %p29
    %p31 = scmp.ne.s32.totalorder %s20, %s23
    %p32 = scmp.eq.s32.totalorder %s15, 1
    %p33 = por %p31, %p32
    %p34 = scmp.ne.s32.totalorder %s23, %s24
    %p35 = scmp.eq.s32.totalorder %s15, 0
    %p36 = por %p34, %p35
    %p37 = scmp.ne.s32.totalorder %s23, %s24
    %p38 = scmp.eq.s32.totalorder %s16, 1
    %p39 = por %p37, %p38
    %p41 = scmp.ne.s32.totalorder %s24, %s40
    %p42 = scmp.eq.s32.totalorder %s16, 0
    %p43 = por %p41, %p42
    %s44 = ssub.s32 %s10, %s17
    %p45 = scmp.eq.s32.totalorder %s44, 0
    %s47 = sadd.s32 %s46, 1
    %s48 = scalar_select %p45, %s46, %s47
    %p51 = pneg %p45
    %p52 = scmp.eq.s32.totalorder %s10, 1
    %p53 = por %p51, %p52
    %p54 = scmp.ne.s32.totalorder %s46, %s49
    %p55 = scmp.eq.s32.totalorder %s10, 0
    %p56 = por %p54, %p55
    %p57 = scmp.ne.s32.totalorder %s46, %s49
    %p58 = scmp.eq.s32.totalorder %s15, 1
    %p59 = por %p57, %p58
    %p60 = scmp.ne.s32.totalorder %s49, %s50
    %p61 = scmp.eq.s32.totalorder %s15, 0
    %p62 = por %p60, %p61
    %p63 = scmp.ne.s32.totalorder %s49, %s50
    %p64 = scmp.eq.s32.totalorder %s16, 1
    %p65 = por %p63, %p64
    %p67 = scmp.ne.s32.totalorder %s50, %s66
    %p68 = scmp.eq.s32.totalorder %s16, 0
    %p69 = por %p67, %p68
    %s70 = ssub.s32 %s10, %s17
    %p71 = scmp.eq.s32.totalorder %s70, 0
    %s73 = sadd.s32 %s72, 1
    %s74 = scalar_select %p71, %s72, %s73
    %p77 = pneg %p71
    %p78 = scmp.eq.s32.totalorder %s10, 1
    %p79 = por %p77, %p78
    %p80 = scmp.ne.s32.totalorder %s72, %s75
    %p81 = scmp.eq.s32.totalorder %s10, 0
    %p82 = por %p80, %p81
    %p83 = scmp.ne.s32.totalorder %s72, %s75
    %p84 = scmp.eq.s32.totalorder %s15, 1
    %p85 = por %p83, %p84
    %p86 = scmp.ne.s32.totalorder %s75, %s76
    %p87 = scmp.eq.s32.totalorder %s15, 0
    %p88 = por %p86, %p87
    %p89 = scmp.ne.s32.totalorder %s75, %s76
    %p90 = scmp.eq.s32.totalorder %s16, 1
    %p91 = por %p89, %p90
    %p93 = scmp.ne.s32.totalorder %s76, %s92
    %p94 = scmp.eq.s32.totalorder %s16, 0
    %p95 = por %p93, %p94
    %s97 = sadd.s32 %s96, 1
    %p100 = scmp.eq.s32.totalorder %s10, 1
    %p101 = scmp.ne.s32.totalorder %s96, %s98
    %p102 = scmp.eq.s32.totalorder %s10, 0
    %p103 = por %p101, %p102
    %p104 = scmp.ne.s32.totalorder %s96, %s98
    %p105 = scmp.eq.s32.totalorder %s15, 1
    %p106 = por %p104, %p105
    %p107 = scmp.ne.s32.totalorder %s98, %s99
    %p108 = scmp.eq.s32.totalorder %s15, 0
    %p109 = por %p107, %p108
    %p110 = scmp.ne.s32.totalorder %s98, %s99
    %p111 = scmp.eq.s32.totalorder %s16, 1
    %p112 = por %p110, %p111
    %p114 = scmp.ne.s32.totalorder %s99, %s113
    %p115 = scmp.eq.s32.totalorder %s16, 0
    %p116 = por %p114, %p115
    %s117 = ssub.s32 %s10, %s17
    %p118 = scmp.eq.s32.totalorder %s117, 0
    %s120 = sadd.s32 %s119, 1
    %s121 = scalar_select %p118, %s119, %s120
    %p124 = pneg %p118
    %p125 = scmp.eq.s32.totalorder %s10, 1
    %p126 = por %p124, %p125
    %p127 = scmp.ne.s32.totalorder %s119, %s122
    %p128 = scmp.eq.s32.totalorder %s10, 0
    %p129 = por %p127, %p128
    %p130 = scmp.ne.s32.totalorder %s119, %s122
    %p131 = scmp.eq.s32.totalorder %s15, 1
    %p132 = por %p130, %p131
    %p133 = scmp.ne.s32.totalorder %s122, %s123
    %p134 = scmp.eq.s32.totalorder %s15, 0
    %p135 = por %p133, %p134
    %p136 = scmp.ne.s32.totalorder %s122, %s123
    %p137 = scmp.eq.s32.totalorder %s16, 1
    %p138 = por %p136, %p137
    %p140 = scmp.ne.s32.totalorder %s123, %s139
    %p141 = scmp.eq.s32.totalorder %s16, 0
    %p142 = por %p140, %p141
    %p143 = scmp.le.s32.totalorder 1, %s10
    %p144 = scmp.lt.s32.totalorder %s10, 3
    %p145 = pnand %p143, %p144
    %p146 = pneg %p145
    // Predicated region
    $region9: #{decoder_forward.17} parent=5 // pred_check
      _
    $region10: #{decoder_forward.17} parent=5 // pred_check_branch
      %148 = sbr.rel (%p145) target = $region12
    $region11: #{decoder_forward.17} parent=5 // pred_region
      %s149 = ssub.s32 %s10, 1
      // Predicated region
      $region13: #{decoder_forward.17} parent=11 // pred_check
        %p150 = pneg %p109
      $region14: #{decoder_forward.17} parent=11 // pred_check_branch
        %152 = sbr.rel (%p150) target = $region16
      $region15: #{decoder_forward.17} parent=11 // pred_region
        _
      $region16: #{decoder_forward.17} parent=11 // pred_fallthru
        _
    $region12: #{decoder_forward.17} parent=5 // pred_fallthru
      _
    %p153 = scmp.lt.s32.totalorder %s10, 2
    // Predicated region
    $region17: #{decoder_forward.17} parent=5 // pred_check
      %p154 = pneg %p153
    $region18: #{decoder_forward.17} parent=5 // pred_check_branch
      %156 = sbr.rel (%p154) target = $region20
    $region19: #{decoder_forward.17} parent=5 // pred_region
      // Predicated region
      $region21: #{decoder_forward.17} parent=19 // pred_check
        %p157 = pneg %p30
      $region22: #{decoder_forward.17} parent=19 // pred_check_branch
        %159 = sbr.rel (%p157) target = $region24
      $region23: #{decoder_forward.17} parent=19 // pred_region
        %p160 = scmp.lt.s32.totalorder %s10, 1
        %s161 = scalar_select %p160, %s10, 1
        %s162 = smul.addr %s161, 4
        %s163 = smul.addr %s162, 8
        %s164 = scalar_lea.vmem %s0, %s163
      $region24: #{decoder_forward.17} parent=19 // pred_fallthru
        _
      // Predicated region
      $region25: #{decoder_forward.17} parent=19 // pred_check
        %p165 = pneg %p56
      $region26: #{decoder_forward.17} parent=19 // pred_check_branch
        %167 = sbr.rel (%p165) target = $region28
      $region27: #{decoder_forward.17} parent=19 // pred_region
        %p168 = scmp.lt.s32.totalorder %s10, 1
        %s169 = scalar_select %p168, %s10, 1
        %s170 = smul.addr %s169, 4
        %s171 = smul.addr %s170, 8
        %s172 = scalar_lea.vmem %s1, %s171
      $region28: #{decoder_forward.17} parent=19 // pred_fallthru
        _
      // Predicated region
      $region29: #{decoder_forward.17} parent=19 // pred_check
        %p173 = pneg %p82
      $region30: #{decoder_forward.17} parent=19 // pred_check_branch
        %175 = sbr.rel (%p173) target = $region32
      $region31: #{decoder_forward.17} parent=19 // pred_region
        %p176 = scmp.lt.s32.totalorder %s10, 1
        %s177 = scalar_select %p176, %s10, 1
        %s178 = smul.addr %s177, 4
        %s179 = smul.addr %s178, 8
        %s180 = scalar_lea.vmem %s2, %s179
      $region32: #{decoder_forward.17} parent=19 // pred_fallthru
        _
    $region20: #{decoder_forward.17} parent=5 // pred_fallthru
      _
    %p181 = scmp.le.s32.totalorder 1, %s10
    %p182 = scmp.lt.s32.totalorder %s10, 3
    %p183 = pnand %p181, %p182
    %p184 = pneg %p183
    // Predicated region
    $region33: #{decoder_forward.17} parent=5 // pred_check
      _
    $region34: #{decoder_forward.17} parent=5 // pred_check_branch
      %186 = sbr.rel (%p183) target = $region36
    $region35: #{decoder_forward.17} parent=5 // pred_region
      %s187 = ssub.s32 %s10, 1
      %p188 = scmp.lt.s32.totalorder %s15, 1
      %s189 = scalar_select %p188, %s15, 1
      %s190 = smul.addr %s189, 4
      %s191 = smul.addr %s190, 8
      %s192 = scalar_lea.vmem %s0, %s191
      %p193 = pneg %p36
      %p194 = pneg %p33
      %p195 = scmp.lt.s32.totalorder %s15, 1
      %s196 = scalar_select %p195, %s15, 1
      %s197 = smul.addr %s196, 4
      %s198 = smul.addr %s197, 8
      %s199 = scalar_lea.vmem %s1, %s198
      %p200 = pneg %p62
      %p201 = pneg %p59
      %p202 = scmp.lt.s32.totalorder %s15, 1
      %s203 = scalar_select %p202, %s15, 1
      %s204 = smul.addr %s203, 4
      %s205 = smul.addr %s204, 8
      %s206 = scalar_lea.vmem %s2, %s205
      %p207 = pneg %p88
      %p208 = pneg %p85
      %p209 = pneg %p109
      %p210 = pneg %p106
      %p211 = pneg %p135
      %p212 = pneg %p132
      %p213 = scmp.lt.s32.totalorder %s15, 1
      %s214 = scalar_select %p213, %s15, 1
      %s215 = smul.addr %s214, 4
      %s216 = smul.addr %s215, 8
      %s217 = scalar_lea.vmem %s4, %s216
      %p218 = scmp.lt.s32.totalorder %s15, 1
      %s219 = scalar_select %p218, %s15, 1
      %s220 = smul.addr %s219, 4
      %s221 = smul.addr %s220, 8
      %s222 = scalar_lea.vmem %s0, %s221
      %p223 = scmp.lt.s32.totalorder %s15, 1
      %s224 = scalar_select %p223, %s15, 1
      %s225 = smul.addr %s224, 4
      %s226 = smul.addr %s225, 8
      %s227 = scalar_lea.vmem %s1, %s226
      %p228 = scmp.lt.s32.totalorder %s15, 1
      %s229 = scalar_select %p228, %s15, 1
      %s230 = smul.addr %s229, 4
      %s231 = smul.addr %s230, 8
      %s232 = scalar_lea.vmem %s2, %s231
      %p233 = scmp.lt.s32.totalorder %s15, 1
      %s234 = scalar_select %p233, %s15, 1
      %s235 = smul.addr %s234, 4
      %s236 = smul.addr %s235, 8
      %s237 = scalar_lea.vmem %s4, %s236
      %v239 = vld [vmem:[%s222] sm:$0xff]
      %v240 = vld [vmem:[%s222 + $0x8] sm:$0xff]
      %v241 = vld [vmem:[%s222 + $0x10] sm:$0xff]
      %v242 = vld [vmem:[%s222 + $0x18] sm:$0xff]
      %v243 = vmul.f32 %v239, 0.35355338
      %v244 = vmul.f32 %v240, 0.35355338
      %v245 = vmul.f32 %v241, 0.35355338
      %v246 = vmul.f32 %v242, 0.35355338
      %v247 = vpack.c.bf16 %v243, %v243
      %v248 = vpack.c.bf16 %v244, %v244
      %v249 = vpack.c.bf16 %v245, %v245
      %v250 = vpack.c.bf16 %v246, %v246
      %v251 = vld [vmem:[%s227] sm:$0xff]
      %v252 = vld [vmem:[%s227 + $0x8] sm:$0xff]
      %v253 = vld [vmem:[%s227 + $0x10] sm:$0xff]
      %v254 = vld [vmem:[%s227 + $0x18] sm:$0xff]
      %v255 = vpack.c.bf16 %v251, %v251
      %v256 = vpack.c.bf16 %v252, %v252
      %v257 = vpack.c.bf16 %v253, %v253
      %v258 = vpack.c.bf16 %v254, %v254
      %v259 = vld [vmem:[%s232] sm:$0xff]
      %v260 = vld [vmem:[%s232 + $0x8] sm:$0xff]
      %v261 = vld [vmem:[%s232 + $0x10] sm:$0xff]
      %v262 = vld [vmem:[%s232 + $0x18] sm:$0xff]
      %v263 = vpack.c.bf16 %v259, %v259
      %v264 = vpack.c.bf16 %v260, %v260
      %v265 = vpack.c.bf16 %v261, %v261
      %v266 = vpack.c.bf16 %v262, %v262
      %v267 = vld [vmem:[%s3] sm:$0xff]
      %vm268 = vcmask 64512
      %v270 = vsel %vm268, %v247, 0
      %v273 = vsel %vm268, %v255, 0
      %275 = vmatprep.subr.bf16.mxu0 0
      %276 = vmatpush1.bf16.xpose.msra.mxu0 %v273
      %277 = vmatprep.subr.bf16.mxu0 0
      %278 = vmatpush1.bf16.xpose.msra.mxu0 0
      %279 = vmatprep.subr.bf16.mxu0 0
      %280 = vmatpush1.bf16.xpose.msra.mxu0 0
      %281 = vmatprep.subr.bf16.mxu0 0
      %282 = vmatpush1.bf16.xpose.msra.mxu0 0
      %283 = vmatprep.subr.bf16.mxu0 0
      %284 = vmatpush1.bf16.xpose.msra.mxu0 0
      %285 = vmatprep.subr.bf16.mxu0 0
      %286 = vmatpush1.bf16.xpose.msra.mxu0 0
      %287 = vmatprep.subr.bf16.mxu0 0
      %288 = vmatpush1.bf16.xpose.msra.mxu0 0
      %289 = vmatprep.subr.bf16.mxu0 0
      %290 = vmatpush1.bf16.xpose.msra.mxu0 0
      %291 = vmatprep.subr.bf16.mxu0 0
      %292 = vmatpush1.bf16.xpose.msra.mxu0 0
      %293 = vmatprep.subr.bf16.mxu0 0
      %294 = vmatpush1.bf16.xpose.msra.mxu0 0
      %295 = vmatprep.subr.bf16.mxu0 0
      %296 = vmatpush1.bf16.xpose.msra.mxu0 0
      %297 = vmatprep.subr.bf16.mxu0 0
      %298 = vmatpush1.bf16.xpose.msra.mxu0 0
      %299 = vmatprep.subr.bf16.mxu0 0
      %300 = vmatpush1.bf16.xpose.msra.mxu0 0
      %301 = vmatprep.subr.bf16.mxu0 0
      %302 = vmatpush1.bf16.xpose.msra.mxu0 0
      %303 = vmatprep.subr.bf16.mxu0 0
      %304 = vmatpush1.bf16.xpose.msra.mxu0 0
      %305 = vmatprep.subr.bf16.mxu0 0
      %306 = vmatpush1.bf16.xpose.msra.mxu0 0
      %307 = vmatprep.mubr.bf16.mxu0 0
      %308 = vmatmul.mubr.bf16.gmra.mrb[0].mxu0 %v270
      %v309 = vpop.f32.mrb[0].mxu0
      %v310 = vadd.f32 %v267, %v309
      %v311 = vpop.f32.mrb[0].mxu0
      %v312 = vpop.f32.mrb[0].mxu0
      %v313 = vpop.f32.mrb[0].mxu0
      %314 = vdwg.mxu0
      %v316 = vsel %vm268, %v248, 0
      %v319 = vsel %vm268, %v256, 0
      %321 = vmatprep.subr.bf16.mxu0 0
      %322 = vmatpush1.bf16.xpose.msra.mxu0 %v319
      %323 = vmatprep.subr.bf16.mxu0 0
      %324 = vmatpush1.bf16.xpose.msra.mxu0 0
      %325 = vmatprep.subr.bf16.mxu0 0
      %326 = vmatpush1.bf16.xpose.msra.mxu0 0
      %327 = vmatprep.subr.bf16.mxu0 0
      %328 = vmatpush1.bf16.xpose.msra.mxu0 0
      %329 = vmatprep.subr.bf16.mxu0 0
      %330 = vmatpush1.bf16.xpose.msra.mxu0 0
      %331 = vmatprep.subr.bf16.mxu0 0
      %332 = vmatpush1.bf16.xpose.msra.mxu0 0
      %333 = vmatprep.subr.bf16.mxu0 0
      %334 = vmatpush1.bf16.xpose.msra.mxu0 0
      %335 = vmatprep.subr.bf16.mxu0 0
      %336 = vmatpush1.bf16.xpose.msra.mxu0 0
      %337 = vmatprep.subr.bf16.mxu0 0
      %338 = vmatpush1.bf16.xpose.msra.mxu0 0
      %339 = vmatprep.subr.bf16.mxu0 0
      %340 = vmatpush1.bf16.xpose.msra.mxu0 0
      %341 = vmatprep.subr.bf16.mxu0 0
      %342 = vmatpush1.bf16.xpose.msra.mxu0 0
      %343 = vmatprep.subr.bf16.mxu0 0
      %344 = vmatpush1.bf16.xpose.msra.mxu0 0
      %345 = vmatprep.subr.bf16.mxu0 0
      %346 = vmatpush1.bf16.xpose.msra.mxu0 0
      %347 = vmatprep.subr.bf16.mxu0 0
      %348 = vmatpush1.bf16.xpose.msra.mxu0 0
      %349 = vmatprep.subr.bf16.mxu0 0
      %350 = vmatpush1.bf16.xpose.msra.mxu0 0
      %351 = vmatprep.subr.bf16.mxu0 0
      %352 = vmatpush1.bf16.xpose.msra.mxu0 0
      %353 = vmatprep.mubr.bf16.mxu0 0
      %354 = vmatmul.mubr.bf16.gmra.mrb[0].mxu0 %v316
      %v355 = vpop.f32.mrb[0].mxu0
      %v356 = vadd.f32 %v267, %v355
      %v357 = vpop.f32.mrb[0].mxu0
      %v358 = vpop.f32.mrb[0].mxu0
      %v359 = vpop.f32.mrb[0].mxu0
      %360 = vdwg.mxu0
      %v362 = vsel %vm268, %v249, 0
      %v365 = vsel %vm268, %v257, 0
      %367 = vmatprep.subr.bf16.mxu0 0
      %368 = vmatpush1.bf16.xpose.msra.mxu0 %v365
      %369 = vmatprep.subr.bf16.mxu0 0
      %370 = vmatpush1.bf16.xpose.msra.mxu0 0
      %371 = vmatprep.subr.bf16.mxu0 0
      %372 = vmatpush1.bf16.xpose.msra.mxu0 0
      %373 = vmatprep.subr.bf16.mxu0 0
      %374 = vmatpush1.bf16.xpose.msra.mxu0 0
      %375 = vmatprep.subr.bf16.mxu0 0
      %376 = vmatpush1.bf16.xpose.msra.mxu0 0
      %377 = vmatprep.subr.bf16.mxu0 0
      %378 = vmatpush1.bf16.xpose.msra.mxu0 0
      %379 = vmatprep.subr.bf16.mxu0 0
      %380 = vmatpush1.bf16.xpose.msra.mxu0 0
      %381 = vmatprep.subr.bf16.mxu0 0
      %382 = vmatpush1.bf16.xpose.msra.mxu0 0
      %383 = vmatprep.subr.bf16.mxu0 0
      %384 = vmatpush1.bf16.xpose.msra.mxu0 0
      %385 = vmatprep.subr.bf16.mxu0 0
      %386 = vmatpush1.bf16.xpose.msra.mxu0 0
      %387 = vmatprep.subr.bf16.mxu0 0
      %388 = vmatpush1.bf16.xpose.msra.mxu0 0
      %389 = vmatprep.subr.bf16.mxu0 0
      %390 = vmatpush1.bf16.xpose.msra.mxu0 0
      %391 = vmatprep.subr.bf16.mxu0 0
      %392 = vmatpush1.bf16.xpose.msra.mxu0 0
      %393 = vmatprep.subr.bf16.mxu0 0
      %394 = vmatpush1.bf16.xpose.msra.mxu0 0
      %395 = vmatprep.subr.bf16.mxu0 0
      %396 = vmatpush1.bf16.xpose.msra.mxu0 0
      %397 = vmatprep.subr.bf16.mxu0 0
      %398 = vmatpush1.bf16.xpose.msra.mxu0 0
      %399 = vmatprep.mubr.bf16.mxu0 0
      %400 = vmatmul.mubr.bf16.gmra.mrb[0].mxu0 %v362
      %v401 = vpop.f32.mrb[0].mxu0
      %v402 = vadd.f32 %v267, %v401
      %v403 = vpop.f32.mrb[0].mxu0
      %v404 = vpop.f32.mrb[0].mxu0
      %v405 = vpop.f32.mrb[0].mxu0
      %406 = vdwg.mxu0
      %v408 = vsel %vm268, %v250, 0
      %v411 = vsel %vm268, %v258, 0
      %413 = vmatprep.subr.bf16.mxu0 0
      %414 = vmatpush1.bf16.xpose.msra.mxu0 %v411
      %415 = vmatprep.subr.bf16.mxu0 0
      %416 = vmatpush1.bf16.xpose.msra.mxu0 0
      %417 = vmatprep.subr.bf16.mxu0 0
      %418 = vmatpush1.bf16.xpose.msra.mxu0 0
      %419 = vmatprep.subr.bf16.mxu0 0
      %420 = vmatpush1.bf16.xpose.msra.mxu0 0
      %421 = vmatprep.subr.bf16.mxu0 0
      %422 = vmatpush1.bf16.xpose.msra.mxu0 0
      %423 = vmatprep.subr.bf16.mxu0 0
      %424 = vmatpush1.bf16.xpose.msra.mxu0 0
      %425 = vmatprep.subr.bf16.mxu0 0
      %426 = vmatpush1.bf16.xpose.msra.mxu0 0
      %427 = vmatprep.subr.bf16.mxu0 0
      %428 = vmatpush1.bf16.xpose.msra.mxu0 0
      %429 = vmatprep.subr.bf16.mxu0 0
      %430 = vmatpush1.bf16.xpose.msra.mxu0 0
      %431 = vmatprep.subr.bf16.mxu0 0
      %432 = vmatpush1.bf16.xpose.msra.mxu0 0
      %433 = vmatprep.subr.bf16.mxu0 0
      %434 = vmatpush1.bf16.xpose.msra.mxu0 0
      %435 = vmatprep.subr.bf16.mxu0 0
      %436 = vmatpush1.bf16.xpose.msra.mxu0 0
      %437 = vmatprep.subr.bf16.mxu0 0
      %438 = vmatpush1.bf16.xpose.msra.mxu0 0
      %439 = vmatprep.subr.bf16.mxu0 0
      %440 = vmatpush1.bf16.xpose.msra.mxu0 0
      %441 = vmatprep.subr.bf16.mxu0 0
      %442 = vmatpush1.bf16.xpose.msra.mxu0 0
      %443 = vmatprep.subr.bf16.mxu0 0
      %444 = vmatpush1.bf16.xpose.msra.mxu0 0
      %445 = vmatprep.mubr.bf16.mxu0 0
      %446 = vmatmul.mubr.bf16.gmra.mrb[0].mxu0 %v408
      %v447 = vpop.f32.mrb[0].mxu0
      %v448 = vadd.f32 %v267, %v447
      %v449 = vpop.f32.mrb[0].mxu0
      %v450 = vpop.f32.mrb[0].mxu0
      %v451 = vpop.f32.mrb[0].mxu0
      %452 = vdwg.mxu0
      %v453 = vsel %vm268, %v310, -inf
      %454 = vmax.xlane.f32.xlu0 %v453
      %v455 = vpop.xlane.xlu0 %454
      %v456 = vsel %vm268, %v356, -inf
      %457 = vmax.xlane.f32.xlu0 %v456
      %v458 = vpop.xlane.xlu0 %457
      %v459 = vsel %vm268, %v402, -inf
      %460 = vmax.xlane.f32.xlu0 %v459
      %v461 = vpop.xlane.xlu0 %460
      %v462 = vsel %vm268, %v448, -inf
      %463 = vmax.xlane.f32.xlu0 %v462
      %v464 = vpop.xlane.xlu0 %463
      %v465 = vsub.f32 %v310, %v455
      %v466 = vsub.f32 %v356, %v458
      %v467 = vsub.f32 %v402, %v461
      %v468 = vsub.f32 %v448, %v464
      %v469 = vmul.f32 %v465, 1.442695
      %v470 = vpow.pop %v469
      %v471 = vmul.f32 %v466, 1.442695
      %v472 = vpow.pop %v471
      %v473 = vmul.f32 %v467, 1.442695
      %v474 = vpow.pop %v473
      %v475 = vmul.f32 %v468, 1.442695
      %v476 = vpow.pop %v475
      %v477 = vsel %vm268, %v470, 0.0
      %478 = vadd.xlane.f32.xlu0 %v477
      %v479 = vpop.xlane.xlu0 %478
      %v480 = vsel %vm268, %v472, 0.0
      %481 = vadd.xlane.f32.xlu0 %v480
      %v482 = vpop.xlane.xlu0 %481
      %v483 = vsel %vm268, %v474, 0.0
      %484 = vadd.xlane.f32.xlu0 %v483
      %v485 = vpop.xlane.xlu0 %484
      %v486 = vsel %vm268, %v476, 0.0
      %487 = vadd.xlane.f32.xlu0 %v486
      %v488 = vpop.xlane.xlu0 %487
      %v489 = vrcp.pop %v479
      %v490 = vrcp.pop %v482
      %v491 = vrcp.pop %v485
      %v492 = vrcp.pop %v488
      %v493 = vmul.f32 %v470, %v489
      %v494 = vmul.f32 %v472, %v490
      %v495 = vmul.f32 %v474, %v491
      %v496 = vmul.f32 %v476, %v492
      %v497 = vpack.c.bf16 %v493, %v493
      %v498 = vpack.c.bf16 %v494, %v494
      %v499 = vpack.c.bf16 %v495, %v495
      %v500 = vpack.c.bf16 %v496, %v496
      %v502 = vsel %vm268, %v497, 0
      %vm504 = vcmask 1043456
      %v506 = vsel %vm504, %v263, 0
      %508 = vmatprep.subr.bf16.mxu0 0
      %509 = vmatpush1.bf16.msra.mxu0 %v506
      %510 = vmatprep.subr.bf16.mxu0 0
      %511 = vmatpush1.bf16.msra.mxu0 0
      %512 = vmatprep.subr.bf16.mxu0 0
      %513 = vmatpush1.bf16.msra.mxu0 0
      %514 = vmatprep.subr.bf16.mxu0 0
      %515 = vmatpush1.bf16.msra.mxu0 0
      %516 = vmatprep.subr.bf16.mxu0 0
      %517 = vmatpush1.bf16.msra.mxu0 0
      %518 = vmatprep.subr.bf16.mxu0 0
      %519 = vmatpush1.bf16.msra.mxu0 0
      %520 = vmatprep.subr.bf16.mxu0 0
      %521 = vmatpush1.bf16.msra.mxu0 0
      %522 = vmatprep.subr.bf16.mxu0 0
      %523 = vmatpush1.bf16.msra.mxu0 0
      %524 = vmatprep.subr.bf16.mxu0 0
      %525 = vmatpush1.bf16.msra.mxu0 0
      %526 = vmatprep.subr.bf16.mxu0 0
      %527 = vmatpush1.bf16.msra.mxu0 0
      %528 = vmatprep.subr.bf16.mxu0 0
      %529 = vmatpush1.bf16.msra.mxu0 0
      %530 = vmatprep.subr.bf16.mxu0 0
      %531 = vmatpush1.bf16.msra.mxu0 0
      %532 = vmatprep.subr.bf16.mxu0 0
      %533 = vmatpush1.bf16.msra.mxu0 0
      %534 = vmatprep.subr.bf16.mxu0 0
      %535 = vmatpush1.bf16.msra.mxu0 0
      %536 = vmatprep.subr.bf16.mxu0 0
      %537 = vmatpush1.bf16.msra.mxu0 0
      %538 = vmatprep.subr.bf16.mxu0 0
      %539 = vmatpush1.bf16.msra.mxu0 0
      %540 = vmatprep.mubr.bf16.mxu0 0
      %541 = vmatmul.mubr.bf16.gmra.mrb[0].mxu0 %v502
      %v542 = vpop.f32.mrb[0].mxu0
      %v543 = vadd.f32 0.0, %v542
      %v544 = vpop.f32.mrb[0].mxu0
      %v545 = vpop.f32.mrb[0].mxu0
      %v546 = vpop.f32.mrb[0].mxu0
      %547 = vdwg.mxu0
      %v549 = vsel %vm268, %v498, 0
      %v552 = vsel %vm504, %v264, 0
      %554 = vmatprep.subr.bf16.mxu0 0
      %555 = vmatpush1.bf16.msra.mxu0 %v552
      %556 = vmatprep.subr.bf16.mxu0 0
      %557 = vmatpush1.bf16.msra.mxu0 0
      %558 = vmatprep.subr.bf16.mxu0 0
      %559 = vmatpush1.bf16.msra.mxu0 0
      %560 = vmatprep.subr.bf16.mxu0 0
      %561 = vmatpush1.bf16.msra.mxu0 0
      %562 = vmatprep.subr.bf16.mxu0 0
      %563 = vmatpush1.bf16.msra.mxu0 0
      %564 = vmatprep.subr.bf16.mxu0 0
      %565 = vmatpush1.bf16.msra.mxu0 0
      %566 = vmatprep.subr.bf16.mxu0 0
      %567 = vmatpush1.bf16.msra.mxu0 0
      %568 = vmatprep.subr.bf16.mxu0 0
      %569 = vmatpush1.bf16.msra.mxu0 0
      %570 = vmatprep.subr.bf16.mxu0 0
      %571 = vmatpush1.bf16.msra.mxu0 0
      %572 = vmatprep.subr.bf16.mxu0 0
      %573 = vmatpush1.bf16.msra.mxu0 0
      %574 = vmatprep.subr.bf16.mxu0 0
      %575 = vmatpush1.bf16.msra.mxu0 0
      %576 = vmatprep.subr.bf16.mxu0 0
      %577 = vmatpush1.bf16.msra.mxu0 0
      %578 = vmatprep.subr.bf16.mxu0 0
      %579 = vmatpush1.bf16.msra.mxu0 0
      %580 = vmatprep.subr.bf16.mxu0 0
      %581 = vmatpush1.bf16.msra.mxu0 0
      %582 = vmatprep.subr.bf16.mxu0 0
      %583 = vmatpush1.bf16.msra.mxu0 0
      %584 = vmatprep.subr.bf16.mxu0 0
      %585 = vmatpush1.bf16.msra.mxu0 0
      %586 = vmatprep.mubr.bf16.mxu0 0
      %587 = vmatmul.mubr.bf16.gmra.mrb[0].mxu0 %v549
      %v588 = vpop.f32.mrb[0].mxu0
      %v589 = vadd.f32 0.0, %v588
      %v590 = vpop.f32.mrb[0].mxu0
      %v591 = vpop.f32.mrb[0].mxu0
      %v592 = vpop.f32.mrb[0].mxu0
      %593 = vdwg.mxu0
      %v595 = vsel %vm268, %v499, 0
      %v598 = vsel %vm504, %v265, 0
      %600 = vmatprep.subr.bf16.mxu0 0
      %601 = vmatpush1.bf16.msra.mxu0 %v598
      %602 = vmatprep.subr.bf16.mxu0 0
      %603 = vmatpush1.bf16.msra.mxu0 0
      %604 = vmatprep.subr.bf16.mxu0 0
      %605 = vmatpush1.bf16.msra.mxu0 0
      %606 = vmatprep.subr.bf16.mxu0 0
      %607 = vmatpush1.bf16.msra.mxu0 0
      %608 = vmatprep.subr.bf16.mxu0 0
      %609 = vmatpush1.bf16.msra.mxu0 0
      %610 = vmatprep.subr.bf16.mxu0 0
      %611 = vmatpush1.bf16.msra.mxu0 0
      %612 = vmatprep.subr.bf16.mxu0 0
      %613 = vmatpush1.bf16.msra.mxu0 0
      %614 = vmatprep.subr.bf16.mxu0 0
      %615 = vmatpush1.bf16.msra.mxu0 0
      %616 = vmatprep.subr.bf16.mxu0 0
      %617 = vmatpush1.bf16.msra.mxu0 0
      %618 = vmatprep.subr.bf16.mxu0 0
      %619 = vmatpush1.bf16.msra.mxu0 0
      %620 = vmatprep.subr.bf16.mxu0 0
      %621 = vmatpush1.bf16.msra.mxu0 0
      %622 = vmatprep.subr.bf16.mxu0 0
      %623 = vmatpush1.bf16.msra.mxu0 0
      %624 = vmatprep.subr.bf16.mxu0 0
      %625 = vmatpush1.bf16.msra.mxu0 0
      %626 = vmatprep.subr.bf16.mxu0 0
      %627 = vmatpush1.bf16.msra.mxu0 0
      %628 = vmatprep.subr.bf16.mxu0 0
      %629 = vmatpush1.bf16.msra.mxu0 0
      %630 = vmatprep.subr.bf16.mxu0 0
      %631 = vmatpush1.bf16.msra.mxu0 0
      %632 = vmatprep.mubr.bf16.mxu0 0
      %633 = vmatmul.mubr.bf16.gmra.mrb[0].mxu0 %v595
      %v634 = vpop.f32.mrb[0].mxu0
      %v635 = vadd.f32 0.0, %v634
      %v636 = vpop.f32.mrb[0].mxu0
      %v637 = vpop.f32.mrb[0].mxu0
      %v638 = vpop.f32.mrb[0].mxu0
      %639 = vdwg.mxu0
      %v641 = vsel %vm268, %v500, 0
      %v644 = vsel %vm504, %v266, 0
      %646 = vmatprep.subr.bf16.mxu0 0
      %647 = vmatpush1.bf16.msra.mxu0 %v644
      %648 = vmatprep.subr.bf16.mxu0 0
      %649 = vmatpush1.bf16.msra.mxu0 0
      %650 = vmatprep.subr.bf16.mxu0 0
      %651 = vmatpush1.bf16.msra.mxu0 0
      %652 = vmatprep.subr.bf16.mxu0 0
      %653 = vmatpush1.bf16.msra.mxu0 0
      %654 = vmatprep.subr.bf16.mxu0 0
      %655 = vmatpush1.bf16.msra.mxu0 0
      %656 = vmatprep.subr.bf16.mxu0 0
      %657 = vmatpush1.bf16.msra.mxu0 0
      %658 = vmatprep.subr.bf16.mxu0 0
      %659 = vmatpush1.bf16.msra.mxu0 0
      %660 = vmatprep.subr.bf16.mxu0 0
      %661 = vmatpush1.bf16.msra.mxu0 0
      %662 = vmatprep.subr.bf16.mxu0 0
      %663 = vmatpush1.bf16.msra.mxu0 0
      %664 = vmatprep.subr.bf16.mxu0 0
      %665 = vmatpush1.bf16.msra.mxu0 0
      %666 = vmatprep.subr.bf16.mxu0 0
      %667 = vmatpush1.bf16.msra.mxu0 0
      %668 = vmatprep.subr.bf16.mxu0 0
      %669 = vmatpush1.bf16.msra.mxu0 0
      %670 = vmatprep.subr.bf16.mxu0 0
      %671 = vmatpush1.bf16.msra.mxu0 0
      %672 = vmatprep.subr.bf16.mxu0 0
      %673 = vmatpush1.bf16.msra.mxu0 0
      %674 = vmatprep.subr.bf16.mxu0 0
      %675 = vmatpush1.bf16.msra.mxu0 0
      %676 = vmatprep.subr.bf16.mxu0 0
      %677 = vmatpush1.bf16.msra.mxu0 0
      %678 = vmatprep.mubr.bf16.mxu0 0
      %679 = vmatmul.mubr.bf16.gmra.mrb[0].mxu0 %v641
      %v680 = vpop.f32.mrb[0].mxu0
      %v681 = vadd.f32 0.0, %v680
      %v682 = vpop.f32.mrb[0].mxu0
      %v683 = vpop.f32.mrb[0].mxu0
      %v684 = vpop.f32.mrb[0].mxu0
      %685 = vdwg.mxu0
      %686 = vst.msk [vmem:[%s237] sm:$0xff] %vm268, %v543
      %687 = vst.msk [vmem:[%s237 + $0x8] sm:$0xff] %vm268, %v589
      %688 = vst.msk [vmem:[%s237 + $0x10] sm:$0xff] %vm268, %v635
      %689 = vst.msk [vmem:[%s237 + $0x18] sm:$0xff] %vm268, %v681
      %p690 = scmp.lt.s32.totalorder %s15, 1
      %s691 = scalar_select %p690, %s15, 1
      %s692 = smul.addr %s691, 4
      %s693 = smul.addr %s692, 8
      %s694 = scalar_lea.vmem %s4, %s693
      // Predicated region
      $region37: #{decoder_forward.17} parent=35 // pred_check
        %p695 = pneg %p132
      $region38: #{decoder_forward.17} parent=35 // pred_check_branch
        %697 = sbr.rel (%p695) target = $region40
      $region39: #{decoder_forward.17} parent=35 // pred_region
        _
      $region40: #{decoder_forward.17} parent=35 // pred_fallthru
        _
    $region36: #{decoder_forward.17} parent=5 // pred_fallthru
      _
    %p698 = scmp.le.s32.totalorder 2, %s10
    // Predicated region
    $region41: #{decoder_forward.17} parent=5 // pred_check
      %p699 = pneg %p698
    $region42: #{decoder_forward.17} parent=5 // pred_check_branch
      %701 = sbr.rel (%p699) target = $region44
    $region43: #{decoder_forward.17} parent=5 // pred_region
      %s702 = ssub.s32 %s10, 2
      // Predicated region
      $region45: #{decoder_forward.17} parent=43 // pred_check
        %p703 = pneg %p138
      $region46: #{decoder_forward.17} parent=43 // pred_check_branch
        %705 = sbr.rel (%p703) target = $region48
      $region47: #{decoder_forward.17} parent=43 // pred_region
        %p706 = scmp.lt.s32.totalorder %s16, 1
        %s707 = scalar_select %p706, %s16, 1
        %s708 = smul.addr %s707, 4
        %s709 = smul.addr %s708, 8
        %s710 = scalar_lea.vmem %s4, %s709
      $region48: #{decoder_forward.17} parent=43 // pred_fallthru
        _
    $region44: #{decoder_forward.17} parent=5 // pred_fallthru
      _
  $region6: #{decoder_forward.17} parent=0 // loop_footer
    %s14 = sadd.s32 1, %s10
  $region7: #{decoder_forward.17} parent=0 // loop_footer_branch
    %9 = sbr.rel target = $region3
  $region8: #{decoder_forward.17} parent=0 // loop_exit
    _

// kernel: decoder_forward.20
$region0: #{decoder_forward.20}
  #allocation0 [shape = 'u32[]', space=smem, size = 0x4, offset = 0x4, fixed_abs, tag = 'smem constant byte address 0x4 - core index']
  #allocation1 [shape = 'u32[144,128]{1,0:T(1,128)}', space=vmem, size = 0x12000, scoped, tag = 'internal scratch']
  %s0 = inlined_call_operand.vmem [shape: f32[16,32], index: 0, kind: input, shape index: {}]
  %s1 = inlined_call_operand.vmem [shape: bf16[32,64], index: 1, kind: input, shape index: {}]
  %s2 = inlined_call_operand.vmem [shape: f32[1,64], index: 2, kind: input, shape index: {}]
  %s3 = inlined_call_operand.vmem [shape: f32[16,64], index: 3, kind: output, shape index: {}]
  %s4 = sld [smem:[#allocation0]]
  $region22: #{decoder_forward.20} parent=0
    _
  %s6 = ssub.s32 1, %s4
  %s7 = scalar_select 0, %s6, %s4
  // Predicated region
  $region2: #{decoder_forward.20} parent=0 // pred_check
    _
  $region3: #{decoder_forward.20} parent=0 // pred_check_branch
    %9 = sbr.rel (0) target = $region5
  $region4: #{decoder_forward.20} parent=0 // pred_region
    _
  $region5: #{decoder_forward.20} parent=0 // pred_fallthru
    _
  // Predicated region
  $region6: #{decoder_forward.20} parent=0 // pred_check
    _
  $region7: #{decoder_forward.20} parent=0 // pred_check_branch
    %11 = sbr.rel (0) target = $region9
  $region8: #{decoder_forward.20} parent=0 // pred_region
    _
  $region9: #{decoder_forward.20} parent=0 // pred_fallthru
    _
  // Predicated region
  $region10: #{decoder_forward.20} parent=0 // pred_check
    _
  $region11: #{decoder_forward.20} parent=0 // pred_check_branch
    %13 = sbr.rel (0) target = $region13
  $region12: #{decoder_forward.20} parent=0 // pred_region
    _
  $region13: #{decoder_forward.20} parent=0 // pred_fallthru
    _
  %v15 = vld [vmem:[%s0] sm:$0xff]
  %v16 = vld [vmem:[%s0 + $0x8] sm:$0xff]
  %v17 = vpack.c.bf16 %v16, %v15
  %v18 = vld [vmem:[%s1] sm:$0xf]
  %v19 = vld [vmem:[%s1 + $0x4] sm:$0xf]
  %v20 = vld [vmem:[%s1 + $0x8] sm:$0xf]
  %v21 = vld [vmem:[%s1 + $0xc] sm:$0xf]
  %v22 = vld [vmem:[%s2] sm:$0x1]
  %v24 = vlaneseq
  %v25 = vshrl.u32 %v24, 7
  %v26 = vsub.s32 0, %v25
  %v27 = vrot.slane %v22, %v26
  %v33 = vunpack.c.l.b16 %v18
  %v34 = vunpack.c.l.b16 %v19
  %v35 = vunpack.c.l.b16 %v20
  %v36 = vunpack.c.l.b16 %v21
  %v37 = vpack.c.b16 %v34, %v33
  %v38 = vpack.c.b16 %v36, %v35
  %vm41 = vcmask 261120
  %v43 = vsel %vm41, %v17, 0
  %45 = vmatprep.subr.bf16.mxu0 0
  %46 = vmatpush1.bf16.msra.mxu0 %v37
  %47 = vmatprep.subr.bf16.mxu0 0
  %48 = vmatpush1.bf16.msra.mxu0 %v38
  %49 = vmatprep.subr.bf16.mxu0 0
  %50 = vmatpush1.bf16.msra.mxu0 0
  %51 = vmatprep.subr.bf16.mxu0 0
  %52 = vmatpush1.bf16.msra.mxu0 0
  %53 = vmatprep.subr.bf16.mxu0 0
  %54 = vmatpush1.bf16.msra.mxu0 0
  %55 = vmatprep.subr.bf16.mxu0 0
  %56 = vmatpush1.bf16.msra.mxu0 0
  %57 = vmatprep.subr.bf16.mxu0 0
  %58 = vmatpush1.bf16.msra.mxu0 0
  %59 = vmatprep.subr.bf16.mxu0 0
  %60 = vmatpush1.bf16.msra.mxu0 0
  %61 = vmatprep.subr.bf16.mxu0 0
  %62 = vmatpush1.bf16.msra.mxu0 0
  %63 = vmatprep.subr.bf16.mxu0 0
  %64 = vmatpush1.bf16.msra.mxu0 0
  %65 = vmatprep.subr.bf16.mxu0 0
  %66 = vmatpush1.bf16.msra.mxu0 0
  %67 = vmatprep.subr.bf16.mxu0 0
  %68 = vmatpush1.bf16.msra.mxu0 0
  %69 = vmatprep.subr.bf16.mxu0 0
  %70 = vmatpush1.bf16.msra.mxu0 0
  %71 = vmatprep.subr.bf16.mxu0 0
  %72 = vmatpush1.bf16.msra.mxu0 0
  %73 = vmatprep.subr.bf16.mxu0 0
  %74 = vmatpush1.bf16.msra.mxu0 0
  %75 = vmatprep.subr.bf16.mxu0 0
  %76 = vmatpush1.bf16.msra.mxu0 0
  %77 = vmatprep.mubr.bf16.mxu0 0
  %78 = vmatmul.mubr.bf16.gmra.mrb[0].mxu0 %v43
  %v79 = vpop.f32.mrb[0].mxu0
  %v80 = vadd.f32 %v27, %v79
  %v81 = vpop.f32.mrb[0].mxu0
  %v82 = vpop.f32.mrb[0].mxu0
  %v83 = vadd.f32 %v27, %v82
  %v84 = vpop.f32.mrb[0].mxu0
  %85 = vdwg.mxu0
  %vm86 = vcmask 523264
  %87 = vst.msk [vmem:[%s3] sm:$0xff] %vm86, %v80
  %88 = vst.msk [vmem:[%s3 + $0x8] sm:$0xff] %vm86, %v83
  // Predicated region
  $region14: #{decoder_forward.20} parent=0 // pred_check
    _
  $region15: #{decoder_forward.20} parent=0 // pred_check_branch
    %90 = sbr.rel (0) target = $region17
  $region16: #{decoder_forward.20} parent=0 // pred_region
    _
  $region17: #{decoder_forward.20} parent=0 // pred_fallthru
    _
  // Predicated region
  $region18: #{decoder_forward.20} parent=0 // pred_check
    _
  $region19: #{decoder_forward.20} parent=0 // pred_check_branch
    %92 = sbr.rel (0) target = $region21
  $region20: #{decoder_forward.20} parent=0 // pred_region
    _
  $region21: #{decoder_forward.20} parent=0 // pred_fallthru
    _

// kernel: decoder_forward.23
$region0: #{decoder_forward.23}
  #allocation0 [shape = 'u32[]', space=smem, size = 0x4, offset = 0x4, fixed_abs, tag = 'smem constant byte address 0x4 - core index']
  #allocation1 [shape = 'u32[144,128]{1,0:T(1,128)}', space=vmem, size = 0x12000, scoped, tag = 'internal scratch']
  %s0 = inlined_call_operand.vmem [shape: f32[16,32], index: 0, kind: input, shape index: {}, may-alias: {0,7}]
  %s1 = inlined_call_operand.vmem [shape: bf16[32,64], index: 1, kind: input, shape index: {}]
  %s2 = inlined_call_operand.vmem [shape: f32[1,64], index: 2, kind: input, shape index: {}]
  %s3 = inlined_call_operand.vmem [shape: bf16[64,32], index: 3, kind: input, shape index: {}]
  %s4 = inlined_call_operand.vmem [shape: f32[1,32], index: 4, kind: input, shape index: {}]
  %s5 = inlined_call_operand.vmem [shape: f32[1,32], index: 5, kind: input, shape index: {}]
  %s6 = inlined_call_operand.vmem [shape: f32[1,32], index: 6, kind: input, shape index: {}]
  %s7 = inlined_call_operand.vmem [shape: f32[16,32], index: 7, kind: output, shape index: {}, may-alias: {0,7}]
  %s8 = sld [smem:[#allocation0]]
  $region38: #{decoder_forward.23} parent=0
    _
  %s10 = ssub.s32 1, %s8
  %s11 = scalar_select 0, %s10, %s8
  // Predicated region
  $region2: #{decoder_forward.23} parent=0 // pred_check
    _
  $region3: #{decoder_forward.23} parent=0 // pred_check_branch
    %13 = sbr.rel (0) target = $region5
  $region4: #{decoder_forward.23} parent=0 // pred_region
    _
  $region5: #{decoder_forward.23} parent=0 // pred_fallthru
    _
  // Predicated region
  $region6: #{decoder_forward.23} parent=0 // pred_check
    _
  $region7: #{decoder_forward.23} parent=0 // pred_check_branch
    %15 = sbr.rel (0) target = $region9
  $region8: #{decoder_forward.23} parent=0 // pred_region
    _
  $region9: #{decoder_forward.23} parent=0 // pred_fallthru
    _
  // Predicated region
  $region10: #{decoder_forward.23} parent=0 // pred_check
    _
  $region11: #{decoder_forward.23} parent=0 // pred_check_branch
    %17 = sbr.rel (0) target = $region13
  $region12: #{decoder_forward.23} parent=0 // pred_region
    _
  $region13: #{decoder_forward.23} parent=0 // pred_fallthru
    _
  // Predicated region
  $region14: #{decoder_forward.23} parent=0 // pred_check
    _
  $region15: #{decoder_forward.23} parent=0 // pred_check_branch
    %19 = sbr.rel (0) target = $region17
  $region16: #{decoder_forward.23} parent=0 // pred_region
    _
  $region17: #{decoder_forward.23} parent=0 // pred_fallthru
    _
  // Predicated region
  $region18: #{decoder_forward.23} parent=0 // pred_check
    _
  $region19: #{decoder_forward.23} parent=0 // pred_check_branch
    %21 = sbr.rel (0) target = $region21
  $region20: #{decoder_forward.23} parent=0 // pred_region
    _
  $region21: #{decoder_forward.23} parent=0 // pred_fallthru
    _
  // Predicated region
  $region22: #{decoder_forward.23} parent=0 // pred_check
    _
  $region23: #{decoder_forward.23} parent=0 // pred_check_branch
    %23 = sbr.rel (0) target = $region25
  $region24: #{decoder_forward.23} parent=0 // pred_region
    _
  $region25: #{decoder_forward.23} parent=0 // pred_fallthru
    _
  // Predicated region
  $region26: #{decoder_forward.23} parent=0 // pred_check
    _
  $region27: #{decoder_forward.23} parent=0 // pred_check_branch
    %25 = sbr.rel (0) target = $region29
  $region28: #{decoder_forward.23} parent=0 // pred_region
    _
  $region29: #{decoder_forward.23} parent=0 // pred_fallthru
    _
  %v27 = vld [vmem:[%s0] sm:$0xff]
  %v28 = vld [vmem:[%s0 + $0x8] sm:$0xff]
  %v29 = vpack.c.bf16 %v28, %v27
  %v30 = vld [vmem:[%s1] sm:$0xf]
  %v31 = vld [vmem:[%s1 + $0x4] sm:$0xf]
  %v32 = vld [vmem:[%s1 + $0x8] sm:$0xf]
  %v33 = vld [vmem:[%s1 + $0xc] sm:$0xf]
  %v34 = vld [vmem:[%s2] sm:$0x1]
  %v36 = vlaneseq
  %v37 = vshrl.u32 %v36, 7
  %v38 = vsub.s32 0, %v37
  %v39 = vrot.slane %v34, %v38
  %v45 = vunpack.c.l.b16 %v30
  %v46 = vunpack.c.l.b16 %v31
  %v47 = vunpack.c.l.b16 %v32
  %v48 = vunpack.c.l.b16 %v33
  %v49 = vpack.c.b16 %v46, %v45
  %v50 = vpack.c.b16 %v48, %v47
  %vm53 = vcmask 261120
  %v55 = vsel %vm53, %v29, 0
  %57 = vmatprep.subr.bf16.mxu0 0
  %58 = vmatpush1.bf16.msra.mxu0 %v49
  %59 = vmatprep.subr.bf16.mxu0 0
  %60 = vmatpush1.bf16.msra.mxu0 %v50
  %61 = vmatprep.subr.bf16.mxu0 0
  %62 = vmatpush1.bf16.msra.mxu0 0
  %63 = vmatprep.subr.bf16.mxu0 0
  %64 = vmatpush1.bf16.msra.mxu0 0
  %65 = vmatprep.subr.bf16.mxu0 0
  %66 = vmatpush1.bf16.msra.mxu0 0
  %67 = vmatprep.subr.bf16.mxu0 0
  %68 = vmatpush1.bf16.msra.mxu0 0
  %69 = vmatprep.subr.bf16.mxu0 0
  %70 = vmatpush1.bf16.msra.mxu0 0
  %71 = vmatprep.subr.bf16.mxu0 0
  %72 = vmatpush1.bf16.msra.mxu0 0
  %73 = vmatprep.subr.bf16.mxu0 0
  %74 = vmatpush1.bf16.msra.mxu0 0
  %75 = vmatprep.subr.bf16.mxu0 0
  %76 = vmatpush1.bf16.msra.mxu0 0
  %77 = vmatprep.subr.bf16.mxu0 0
  %78 = vmatpush1.bf16.msra.mxu0 0
  %79 = vmatprep.subr.bf16.mxu0 0
  %80 = vmatpush1.bf16.msra.mxu0 0
  %81 = vmatprep.subr.bf16.mxu0 0
  %82 = vmatpush1.bf16.msra.mxu0 0
  %83 = vmatprep.subr.bf16.mxu0 0
  %84 = vmatpush1.bf16.msra.mxu0 0
  %85 = vmatprep.subr.bf16.mxu0 0
  %86 = vmatpush1.bf16.msra.mxu0 0
  %87 = vmatprep.subr.bf16.mxu0 0
  %88 = vmatpush1.bf16.msra.mxu0 0
  %89 = vmatprep.mubr.bf16.mxu0 0
  %90 = vmatmul.mubr.bf16.gmra.mrb[0].mxu0 %v55
  %v91 = vpop.f32.mrb[0].mxu0
  %v92 = vadd.f32 %v39, %v91
  %v93 = vpop.f32.mrb[0].mxu0
  %v94 = vpop.f32.mrb[0].mxu0
  %v95 = vadd.f32 %v39, %v94
  %v96 = vpop.f32.mrb[0].mxu0
  %97 = vdwg.mxu0
  %v98 = vmax.f32 %v92, 0.0
  %v99 = vmax.f32 %v95, 0.0
  %v100 = vpack.c.bf16 %v99, %v98
  %v101 = vld [vmem:[%s3] sm:$0xf]
  %v102 = vld [vmem:[%s3 + $0x4] sm:$0xf]
  %v103 = vld [vmem:[%s3 + $0x8] sm:$0xf]
  %v104 = vld [vmem:[%s3 + $0xc] sm:$0xf]
  %v105 = vld [vmem:[%s3 + $0x10] sm:$0xf]
  %v106 = vld [vmem:[%s3 + $0x14] sm:$0xf]
  %v107 = vld [vmem:[%s3 + $0x18] sm:$0xf]
  %v108 = vld [vmem:[%s3 + $0x1c] sm:$0xf]
  %v109 = vld [vmem:[%s4] sm:$0x1]
  %v111 = vlaneseq
  %v112 = vshrl.u32 %v111, 7
  %v113 = vsub.s32 0, %v112
  %v114 = vrot.slane %v109, %v113
  %v124 = vunpack.c.l.b16 %v101
  %v125 = vunpack.c.l.b16 %v102
  %v126 = vunpack.c.l.b16 %v103
  %v127 = vunpack.c.l.b16 %v104
  %v128 = vunpack.c.l.b16 %v105
  %v129 = vunpack.c.l.b16 %v106
  %v130 = vunpack.c.l.b16 %v107
  %v131 = vunpack.c.l.b16 %v108
  %v132 = vpack.c.b16 %v125, %v124
  %v133 = vpack.c.b16 %v127, %v126
  %v134 = vpack.c.b16 %v129, %v128
  %v135 = vpack.c.b16 %v131, %v130
  %vm140 = vcmask 523264
  %v142 = vsel %vm140, %v100, 0
  %144 = vmatprep.subr.bf16.mxu0 0
  %145 = vmatpush1.bf16.msra.mxu0 %v132
  %146 = vmatprep.subr.bf16.mxu0 0
  %147 = vmatpush1.bf16.msra.mxu0 %v133
  %148 = vmatprep.subr.bf16.mxu0 0
  %149 = vmatpush1.bf16.msra.mxu0 %v134
  %150 = vmatprep.subr.bf16.mxu0 0
  %151 = vmatpush1.bf16.msra.mxu0 %v135
  %152 = vmatprep.subr.bf16.mxu0 0
  %153 = vmatpush1.bf16.msra.mxu0 0
  %154 = vmatprep.subr.bf16.mxu0 0
  %155 = vmatpush1.bf16.msra.mxu0 0
  %156 = vmatprep.subr.bf16.mxu0 0
  %157 = vmatpush1.bf16.msra.mxu0 0
  %158 = vmatprep.subr.bf16.mxu0 0
  %159 = vmatpush1.bf16.msra.mxu0 0
  %160 = vmatprep.subr.bf16.mxu0 0
  %161 = vmatpush1.bf16.msra.mxu0 0
  %162 = vmatprep.subr.bf16.mxu0 0
  %163 = vmatpush1.bf16.msra.mxu0 0
  %164 = vmatprep.subr.bf16.mxu0 0
  %165 = vmatpush1.bf16.msra.mxu0 0
  %166 = vmatprep.subr.bf16.mxu0 0
  %167 = vmatpush1.bf16.msra.mxu0 0
  %168 = vmatprep.subr.bf16.mxu0 0
  %169 = vmatpush1.bf16.msra.mxu0 0
  %170 = vmatprep.subr.bf16.mxu0 0
  %171 = vmatpush1.bf16.msra.mxu0 0
  %172 = vmatprep.subr.bf16.mxu0 0
  %173 = vmatpush1.bf16.msra.mxu0 0
  %174 = vmatprep.subr.bf16.mxu0 0
  %175 = vmatpush1.bf16.msra.mxu0 0
  %176 = vmatprep.mubr.bf16.mxu0 0
  %177 = vmatmul.mubr.bf16.gmra.mrb[0].mxu0 %v142
  %v178 = vpop.f32.mrb[0].mxu0
  %v179 = vadd.f32 %v114, %v178
  %v180 = vpop.f32.mrb[0].mxu0
  %v181 = vpop.f32.mrb[0].mxu0
  %v182 = vadd.f32 %v114, %v181
  %v183 = vpop.f32.mrb[0].mxu0
  %184 = vdwg.mxu0
  %v185 = vadd.f32 %v27, %v179
  %v186 = vadd.f32 %v28, %v182
  %v187 = vld [vmem:[%s5] sm:$0x1]
  %v188 = vld [vmem:[%s6] sm:$0x1]
  %v189 = vsel %vm53, %v185, 0.0
  %190 = vadd.xlane.f32.xlu0 %v189
  %v191 = vpop.xlane.xlu0 %190
  %v192 = vsel %vm53, %v186, 0.0
  %193 = vadd.xlane.f32.xlu0 %v192
  %v194 = vpop.xlane.xlu0 %193
  %v195 = vrcp.pop 32.0
  %v196 = vmul.f32 %v191, %v195
  %v197 = vmul.f32 %v194, %v195
  %v198 = vsub.f32 %v185, %v196
  %v199 = vsub.f32 %v186, %v197
  %v200 = vmul.f32 %v198, %v198
  %v201 = vmul.f32 %v199, %v199
  %v202 = vsel %vm53, %v200, 0.0
  %203 = vadd.xlane.f32.xlu0 %v202
  %v204 = vpop.xlane.xlu0 %203
  %v205 = vsel %vm53, %v201, 0.0
  %206 = vadd.xlane.f32.xlu0 %v205
  %v207 = vpop.xlane.xlu0 %206
  %v208 = vmul.f32 %v204, %v195
  %v209 = vmul.f32 %v207, %v195
  %v210 = vadd.f32 %v208, 1e-05
  %v211 = vadd.f32 %v209, 1e-05
  %v212 = vrsqrt.pop %v210
  %v213 = vrsqrt.pop %v211
  %v214 = vmul.f32 %v198, %v212
  %v215 = vmul.f32 %v199, %v213
  %v217 = vlaneseq
  %v218 = vshrl.u32 %v217, 7
  %v219 = vsub.s32 0, %v218
  %v220 = vrot.slane %v187, %v219
  %v222 = vmul.f32 %v220, %v214
  %v223 = vmul.f32 %v220, %v215
  %v225 = vlaneseq
  %v226 = vshrl.u32 %v225, 7
  %v227 = vsub.s32 0, %v226
  %v228 = vrot.slane %v188, %v227
  %v230 = vadd.f32 %v222, %v228
  %v231 = vadd.f32 %v223, %v228
  %232 = vst.msk [vmem:[%s7] sm:$0xff] %vm53, %v230
  %233 = vst.msk [vmem:[%s7 + $0x8] sm:$0xff] %vm53, %v231
  // Predicated region
  $region30: #{decoder_forward.23} parent=0 // pred_check
    _
  $region31: #{decoder_forward.23} parent=0 // pred_check_branch
    %235 = sbr.rel (0) target = $region33
  $region32: #{decoder_forward.23} parent=0 // pred_region
    _
  $region33: #{decoder_forward.23} parent=0 // pred_fallthru
    _
  // Predicated region
  $region34: #{decoder_forward.23} parent=0 // pred_check
    _
  $region35: #{decoder_forward.23} parent=0 // pred_check_branch
    %237 = sbr.rel (0) target = $region37
  $region36: #{decoder_forward.23} parent=0 // pred_region
    _
  $region37: #{decoder_forward.23} parent=0 // pred_fallthru
    _

// kernel: decoder_forward.21
$region0: #{decoder_forward.21}
  #allocation0 [shape = 'u32[]', space=smem, size = 0x4, offset = 0x4, fixed_abs, tag = 'smem constant byte address 0x4 - core index']
  #allocation1 [shape = 'u32[144,128]{1,0:T(1,128)}', space=vmem, size = 0x12000, scoped, tag = 'internal scratch']
  %s0 = inlined_call_operand.vmem [shape: f32[2,4,8,8], index: 0, kind: input, shape index: {}]
  %s1 = inlined_call_operand.vmem [shape: f32[2,4,8,8], index: 1, kind: input, shape index: {}]
  %s2 = inlined_call_operand.vmem [shape: f32[2,4,8,8], index: 2, kind: input, shape index: {}]
  %s3 = inlined_call_operand.vmem [shape: f32[2,4,8,8], index: 3, kind: output, shape index: {}]
  %s4 = sld [smem:[#allocation0]]
  $region45: #{decoder_forward.21} parent=0
    _
  %s6 = ssub.s32 1, %s4
  %s7 = scalar_select 0, %s6, %s4
  loop: start=0, step=1, limit=4
  $region2: #{decoder_forward.21} parent=0 // loop_pre_header
    _
  $region3: #{decoder_forward.21} parent=0 // loop_header
    %s9 = sphi 0, %s13
    %p10 = scmp.ge.s32.totalorder %s9, 4
    %s19 = sphi 0, %s21
    %s22 = sphi 0, %s19
    %s23 = sphi 0, %s22
    %s39 = sphi 0, %s23
    %s45 = sphi 0, %s47
    %s48 = sphi 0, %s45
    %s49 = sphi 0, %s48
    %s65 = sphi 0, %s49
    %s71 = sphi 0, %s73
    %s74 = sphi 0, %s71
    %s75 = sphi 0, %s74
    %s91 = sphi 0, %s75
    %s97 = sphi 0, %s99
    %s100 = sphi 0, %s97
    %s101 = sphi 0, %s100
    %s117 = sphi 0, %s101
  $region4: #{decoder_forward.21} parent=0 // loop_header_branch
    %12 = sbr.rel (%p10) target = $region8
  $region5: #{decoder_forward.21} parent=0 // loop_body
    %s14 = ssub.s32 %s9, 1
    %s15 = ssub.s32 %s9, 2
    %s16 = sadd.s32 %s9, 1
    %s17 = ssub.s32 %s9, %s16
    %p18 = scmp.eq.s32.totalorder %s17, 0
    %s20 = sadd.s32 %s19, 1
    %s21 = scalar_select %p18, %s19, %s20
    %p24 = pneg %p18
    %p25 = scmp.eq.s32.totalorder %s9, 1
    %p26 = por %p24, %p25
    %p27 = scmp.ne.s32.totalorder %s19, %s22
    %p28 = scmp.eq.s32.totalorder %s9, 0
    %p29 = por %p27, %p28
    %p30 = scmp.ne.s32.totalorder %s19, %s22
    %p31 = scmp.eq.s32.totalorder %s14, 1
    %p32 = por %p30, %p31
    %p33 = scmp.ne.s32.totalorder %s22, %s23
    %p34 = scmp.eq.s32.totalorder %s14, 0
    %p35 = por %p33, %p34
    %p36 = scmp.ne.s32.totalorder %s22, %s23
    %p37 = scmp.eq.s32.totalorder %s15, 1
    %p38 = por %p36, %p37
    %p40 = scmp.ne.s32.totalorder %s23, %s39
    %p41 = scmp.eq.s32.totalorder %s15, 0
    %p42 = por %p40, %p41
    %s43 = ssub.s32 %s9, %s16
    %p44 = scmp.eq.s32.totalorder %s43, 0
    %s46 = sadd.s32 %s45, 1
    %s47 = scalar_select %p44, %s45, %s46
    %p50 = pneg %p44
    %p51 = scmp.eq.s32.totalorder %s9, 1
    %p52 = por %p50, %p51
    %p53 = scmp.ne.s32.totalorder %s45, %s48
    %p54 = scmp.eq.s32.totalorder %s9, 0
    %p55 = por %p53, %p54
    %p56 = scmp.ne.s32.totalorder %s45, %s48
    %p57 = scmp.eq.s32.totalorder %s14, 1
    %p58 = por %p56, %p57
    %p59 = scmp.ne.s32.totalorder %s48, %s49
    %p60 = scmp.eq.s32.totalorder %s14, 0
    %p61 = por %p59, %p60
    %p62 = scmp.ne.s32.totalorder %s48, %s49
    %p63 = scmp.eq.s32.totalorder %s15, 1
    %p64 = por %p62, %p63
    %p66 = scmp.ne.s32.totalorder %s49, %s65
    %p67 = scmp.eq.s32.totalorder %s15, 0
    %p68 = por %p66, %p67
    %s69 = ssub.s32 %s9, %s16
    %p70 = scmp.eq.s32.totalorder %s69, 0
    %s72 = sadd.s32 %s71, 1
    %s73 = scalar_select %p70, %s71, %s72
    %p76 = pneg %p70
    %p77 = scmp.eq.s32.totalorder %s9, 1
    %p78 = por %p76, %p77
    %p79 = scmp.ne.s32.totalorder %s71, %s74
    %p80 = scmp.eq.s32.totalorder %s9, 0
    %p81 = por %p79, %p80
    %p82 = scmp.ne.s32.totalorder %s71, %s74
    %p83 = scmp.eq.s32.totalorder %s14, 1
    %p84 = por %p82, %p83
    %p85 = scmp.ne.s32.totalorder %s74, %s75
    %p86 = scmp.eq.s32.totalorder %s14, 0
    %p87 = por %p85, %p86
    %p88 = scmp.ne.s32.totalorder %s74, %s75
    %p89 = scmp.eq.s32.totalorder %s15, 1
    %p90 = por %p88, %p89
    %p92 = scmp.ne.s32.totalorder %s75, %s91
    %p93 = scmp.eq.s32.totalorder %s15, 0
    %p94 = por %p92, %p93
    %s95 = ssub.s32 %s9, %s16
    %p96 = scmp.eq.s32.totalorder %s95, 0
    %s98 = sadd.s32 %s97, 1
    %s99 = scalar_select %p96, %s97, %s98
    %p102 = pneg %p96
    %p103 = scmp.eq.s32.totalorder %s9, 1
    %p104 = por %p102, %p103
    %p105 = scmp.ne.s32.totalorder %s97, %s100
    %p106 = scmp.eq.s32.totalorder %s9, 0
    %p107 = por %p105, %p106
    %p108 = scmp.ne.s32.totalorder %s97, %s100
    %p109 = scmp.eq.s32.totalorder %s14, 1
    %p110 = por %p108, %p109
    %p111 = scmp.ne.s32.totalorder %s100, %s101
    %p112 = scmp.eq.s32.totalorder %s14, 0
    %p113 = por %p111, %p112
    %p114 = scmp.ne.s32.totalorder %s100, %s101
    %p115 = scmp.eq.s32.totalorder %s15, 1
    %p116 = por %p114, %p115
    %p118 = scmp.ne.s32.totalorder %s101, %s117
    %p119 = scmp.eq.s32.totalorder %s15, 0
    %p120 = por %p118, %p119
    %p121 = scmp.le.s32.totalorder 1, %s9
    %p122 = scmp.lt.s32.totalorder %s9, 3
    %p123 = pnand %p121, %p122
    %p124 = pneg %p123
    // Predicated region
    $region9: #{decoder_forward.21} parent=5 // pred_check
      _
    $region10: #{decoder_forward.21} parent=5 // pred_check_branch
      %126 = sbr.rel (%p123) target = $region12
    $region11: #{decoder_forward.21} parent=5 // pred_region
      %s127 = ssub.s32 %s9, 1
    $region12: #{decoder_forward.21} parent=5 // pred_fallthru
      _
    %p128 = scmp.lt.s32.totalorder %s9, 2
    // Predicated region
    $region13: #{decoder_forward.21} parent=5 // pred_check
      %p129 = pneg %p128
    $region14: #{decoder_forward.21} parent=5 // pred_check_branch
      %131 = sbr.rel (%p129) target = $region16
    $region15: #{decoder_forward.21} parent=5 // pred_region
      // Predicated region
      $region17: #{decoder_forward.21} parent=15 // pred_check
        %p132 = pneg %p29
      $region18: #{decoder_forward.21} parent=15 // pred_check_branch
        %134 = sbr.rel (%p132) target = $region20
      $region19: #{decoder_forward.21} parent=15 // pred_region
        %p135 = scmp.lt.s32.totalorder %s9, 1
        %s136 = scalar_select %p135, %s9, 1
        %s137 = smul.addr %s136, 4
        %s138 = smul.addr %s137, 8
        %s139 = scalar_lea.vmem %s0, %s138
      $region20: #{decoder_forward.21} parent=15 // pred_fallthru
        _
      // Predicated region
      $region21: #{decoder_forward.21} parent=15 // pred_check
        %p140 = pneg %p55
      $region22: #{decoder_forward.21} parent=15 // pred_check_branch
        %142 = sbr.rel (%p140) target = $region24
      $region23: #{decoder_forward.21} parent=15 // pred_region
        %p143 = scmp.lt.s32.totalorder %s9, 1
        %s144 = scalar_select %p143, %s9, 1
        %s145 = smul.addr %s144, 4
        %s146 = smul.addr %s145, 8
        %s147 = scalar_lea.vmem %s1, %s146
      $region24: #{decoder_forward.21} parent=15 // pred_fallthru
        _
      // Predicated region
      $region25: #{decoder_forward.21} parent=15 // pred_check
        %p148 = pneg %p81
      $region26: #{decoder_forward.21} parent=15 // pred_check_branch
        %150 = sbr.rel (%p148) target = $region28
      $region27: #{decoder_forward.21} parent=15 // pred_region
        %p151 = scmp.lt.s32.totalorder %s9, 1
        %s152 = scalar_select %p151, %s9, 1
        %s153 = smul.addr %s152, 4
        %s154 = smul.addr %s153, 8
        %s155 = scalar_lea.vmem %s2, %s154
      $region28: #{decoder_forward.21} parent=15 // pred_fallthru
        _
    $region16: #{decoder_forward.21} parent=5 // pred_fallthru
      _
    %p156 = scmp.le.s32.totalorder 1, %s9
    %p157 = scmp.lt.s32.totalorder %s9, 3
    %p158 = pnand %p156, %p157
    %p159 = pneg %p158
    // Predicated region
    $region29: #{decoder_forward.21} parent=5 // pred_check
      _
    $region30: #{decoder_forward.21} parent=5 // pred_check_branch
      %161 = sbr.rel (%p158) target = $region32
    $region31: #{decoder_forward.21} parent=5 // pred_region
      %s162 = ssub.s32 %s9, 1
      %p163 = scmp.lt.s32.totalorder %s14, 1
      %s164 = scalar_select %p163, %s14, 1
      %s165 = smul.addr %s164, 4
      %s166 = smul.addr %s165, 8
      %s167 = scalar_lea.vmem %s0, %s166
      %p168 = pneg %p35
      %p169 = pneg %p32
      %p170 = scmp.lt.s32.totalorder %s14, 1
      %s171 = scalar_select %p170, %s14, 1
      %s172 = smul.addr %s171, 4
      %s173 = smul.addr %s172, 8
      %s174 = scalar_lea.vmem %s1, %s173
      %p175 = pneg %p61
      %p176 = pneg %p58
      %p177 = scmp.lt.s32.totalorder %s14, 1
      %s178 = scalar_select %p177, %s14, 1
      %s179 = smul.addr %s178, 4
      %s180 = smul.addr %s179, 8
      %s181 = scalar_lea.vmem %s2, %s180
      %p182 = pneg %p87
      %p183 = pneg %p84
      %p184 = pneg %p113
      %p185 = pneg %p110
      %p186 = scmp.lt.s32.totalorder %s14, 1
      %s187 = scalar_select %p186, %s14, 1
      %s188 = smul.addr %s187, 4
      %s189 = smul.addr %s188, 8
      %s190 = scalar_lea.vmem %s3, %s189
      %p191 = scmp.lt.s32.totalorder %s14, 1
      %s192 = scalar_select %p191, %s14, 1
      %s193 = smul.addr %s192, 4
      %s194 = smul.addr %s193, 8
      %s195 = scalar_lea.vmem %s0, %s194
      %p196 = scmp.lt.s32.totalorder %s14, 1
      %s197 = scalar_select %p196, %s14, 1
      %s198 = smul.addr %s197, 4
      %s199 = smul.addr %s198, 8
      %s200 = scalar_lea.vmem %s1, %s199
      %p201 = scmp.lt.s32.totalorder %s14, 1
      %s202 = scalar_select %p201, %s14, 1
      %s203 = smul.addr %s202, 4
      %s204 = smul.addr %s203, 8
      %s205 = scalar_lea.vmem %s2, %s204
      %p206 = scmp.lt.s32.totalorder %s14, 1
      %s207 = scalar_select %p206, %s14, 1
      %s208 = smul.addr %s207, 4
      %s209 = smul.addr %s208, 8
      %s210 = scalar_lea.vmem %s3, %s209
      %v212 = vld [vmem:[%s195] sm:$0xff]
      %v213 = vld [vmem:[%s195 + $0x8] sm:$0xff]
      %v214 = vld [vmem:[%s195 + $0x10] sm:$0xff]
      %v215 = vld [vmem:[%s195 + $0x18] sm:$0xff]
      %v216 = vmul.f32 %v212, 0.35355338
      %v217 = vmul.f32 %v213, 0.35355338
      %v218 = vmul.f32 %v214, 0.35355338
      %v219 = vmul.f32 %v215, 0.35355338
      %v220 = vpack.c.bf16 %v216, %v216
      %v221 = vpack.c.bf16 %v217, %v217
      %v222 = vpack.c.bf16 %v218, %v218
      %v223 = vpack.c.bf16 %v219, %v219
      %v224 = vld [vmem:[%s200] sm:$0xff]
      %v225 = vld [vmem:[%s200 + $0x8] sm:$0xff]
      %v226 = vld [vmem:[%s200 + $0x10] sm:$0xff]
      %v227 = vld [vmem:[%s200 + $0x18] sm:$0xff]
      %v228 = vpack.c.bf16 %v224, %v224
      %v229 = vpack.c.bf16 %v225, %v225
      %v230 = vpack.c.bf16 %v226, %v226
      %v231 = vpack.c.bf16 %v227, %v227
      %v232 = vld [vmem:[%s205] sm:$0xff]
      %v233 = vld [vmem:[%s205 + $0x8] sm:$0xff]
      %v234 = vld [vmem:[%s205 + $0x10] sm:$0xff]
      %v235 = vld [vmem:[%s205 + $0x18] sm:$0xff]
      %v236 = vpack.c.bf16 %v232, %v232
      %v237 = vpack.c.bf16 %v233, %v233
      %v238 = vpack.c.bf16 %v234, %v234
      %v239 = vpack.c.bf16 %v235, %v235
      %vm240 = vcmask 64512
      %v242 = vsel %vm240, %v220, 0
      %v245 = vsel %vm240, %v228, 0
      %247 = vmatprep.subr.bf16.mxu0 0
      %248 = vmatpush1.bf16.xpose.msra.mxu0 %v245
      %249 = vmatprep.subr.bf16.mxu0 0
      %250 = vmatpush1.bf16.xpose.msra.mxu0 0
      %251 = vmatprep.subr.bf16.mxu0 0
      %252 = vmatpush1.bf16.xpose.msra.mxu0 0
      %253 = vmatprep.subr.bf16.mxu0 0
      %254 = vmatpush1.bf16.xpose.msra.mxu0 0
      %255 = vmatprep.subr.bf16.mxu0 0
      %256 = vmatpush1.bf16.xpose.msra.mxu0 0
      %257 = vmatprep.subr.bf16.mxu0 0
      %258 = vmatpush1.bf16.xpose.msra.mxu0 0
      %259 = vmatprep.subr.bf16.mxu0 0
      %260 = vmatpush1.bf16.xpose.msra.mxu0 0
      %261 = vmatprep.subr.bf16.mxu0 0
      %262 = vmatpush1.bf16.xpose.msra.mxu0 0
      %263 = vmatprep.subr.bf16.mxu0 0
      %264 = vmatpush1.bf16.xpose.msra.mxu0 0
      %265 = vmatprep.subr.bf16.mxu0 0
      %266 = vmatpush1.bf16.xpose.msra.mxu0 0
      %267 = vmatprep.subr.bf16.mxu0 0
      %268 = vmatpush1.bf16.xpose.msra.mxu0 0
      %269 = vmatprep.subr.bf16.mxu0 0
      %270 = vmatpush1.bf16.xpose.msra.mxu0 0
      %271 = vmatprep.subr.bf16.mxu0 0
      %272 = vmatpush1.bf16.xpose.msra.mxu0 0
      %273 = vmatprep.subr.bf16.mxu0 0
      %274 = vmatpush1.bf16.xpose.msra.mxu0 0
      %275 = vmatprep.subr.bf16.mxu0 0
      %276 = vmatpush1.bf16.xpose.msra.mxu0 0
      %277 = vmatprep.subr.bf16.mxu0 0
      %278 = vmatpush1.bf16.xpose.msra.mxu0 0
      %279 = vmatprep.mubr.bf16.mxu0 0
      %280 = vmatmul.mubr.bf16.gmra.mrb[0].mxu0 %v242
      %v281 = vpop.f32.mrb[0].mxu0
      %v282 = vadd.f32 0.0, %v281
      %v283 = vpop.f32.mrb[0].mxu0
      %v284 = vpop.f32.mrb[0].mxu0
      %v285 = vpop.f32.mrb[0].mxu0
      %286 = vdwg.mxu0
      %v288 = vsel %vm240, %v221, 0
      %v291 = vsel %vm240, %v229, 0
      %293 = vmatprep.subr.bf16.mxu0 0
      %294 = vmatpush1.bf16.xpose.msra.mxu0 %v291
      %295 = vmatprep.subr.bf16.mxu0 0
      %296 = vmatpush1.bf16.xpose.msra.mxu0 0
      %297 = vmatprep.subr.bf16.mxu0 0
      %298 = vmatpush1.bf16.xpose.msra.mxu0 0
      %299 = vmatprep.subr.bf16.mxu0 0
      %300 = vmatpush1.bf16.xpose.msra.mxu0 0
      %301 = vmatprep.subr.bf16.mxu0 0
      %302 = vmatpush1.bf16.xpose.msra.mxu0 0
      %303 = vmatprep.subr.bf16.mxu0 0
      %304 = vmatpush1.bf16.xpose.msra.mxu0 0
      %305 = vmatprep.subr.bf16.mxu0 0
      %306 = vmatpush1.bf16.xpose.msra.mxu0 0
      %307 = vmatprep.subr.bf16.mxu0 0
      %308 = vmatpush1.bf16.xpose.msra.mxu0 0
      %309 = vmatprep.subr.bf16.mxu0 0
      %310 = vmatpush1.bf16.xpose.msra.mxu0 0
      %311 = vmatprep.subr.bf16.mxu0 0
      %312 = vmatpush1.bf16.xpose.msra.mxu0 0
      %313 = vmatprep.subr.bf16.mxu0 0
      %314 = vmatpush1.bf16.xpose.msra.mxu0 0
      %315 = vmatprep.subr.bf16.mxu0 0
      %316 = vmatpush1.bf16.xpose.msra.mxu0 0
      %317 = vmatprep.subr.bf16.mxu0 0
      %318 = vmatpush1.bf16.xpose.msra.mxu0 0
      %319 = vmatprep.subr.bf16.mxu0 0
      %320 = vmatpush1.bf16.xpose.msra.mxu0 0
      %321 = vmatprep.subr.bf16.mxu0 0
      %322 = vmatpush1.bf16.xpose.msra.mxu0 0
      %323 = vmatprep.subr.bf16.mxu0 0
      %324 = vmatpush1.bf16.xpose.msra.mxu0 0
      %325 = vmatprep.mubr.bf16.mxu0 0
      %326 = vmatmul.mubr.bf16.gmra.mrb[0].mxu0 %v288
      %v327 = vpop.f32.mrb[0].mxu0
      %v328 = vadd.f32 0.0, %v327
      %v329 = vpop.f32.mrb[0].mxu0
      %v330 = vpop.f32.mrb[0].mxu0
      %v331 = vpop.f32.mrb[0].mxu0
      %332 = vdwg.mxu0
      %v334 = vsel %vm240, %v222, 0
      %v337 = vsel %vm240, %v230, 0
      %339 = vmatprep.subr.bf16.mxu0 0
      %340 = vmatpush1.bf16.xpose.msra.mxu0 %v337
      %341 = vmatprep.subr.bf16.mxu0 0
      %342 = vmatpush1.bf16.xpose.msra.mxu0 0
      %343 = vmatprep.subr.bf16.mxu0 0
      %344 = vmatpush1.bf16.xpose.msra.mxu0 0
      %345 = vmatprep.subr.bf16.mxu0 0
      %346 = vmatpush1.bf16.xpose.msra.mxu0 0
      %347 = vmatprep.subr.bf16.mxu0 0
      %348 = vmatpush1.bf16.xpose.msra.mxu0 0
      %349 = vmatprep.subr.bf16.mxu0 0
      %350 = vmatpush1.bf16.xpose.msra.mxu0 0
      %351 = vmatprep.subr.bf16.mxu0 0
      %352 = vmatpush1.bf16.xpose.msra.mxu0 0
      %353 = vmatprep.subr.bf16.mxu0 0
      %354 = vmatpush1.bf16.xpose.msra.mxu0 0
      %355 = vmatprep.subr.bf16.mxu0 0
      %356 = vmatpush1.bf16.xpose.msra.mxu0 0
      %357 = vmatprep.subr.bf16.mxu0 0
      %358 = vmatpush1.bf16.xpose.msra.mxu0 0
      %359 = vmatprep.subr.bf16.mxu0 0
      %360 = vmatpush1.bf16.xpose.msra.mxu0 0
      %361 = vmatprep.subr.bf16.mxu0 0
      %362 = vmatpush1.bf16.xpose.msra.mxu0 0
      %363 = vmatprep.subr.bf16.mxu0 0
      %364 = vmatpush1.bf16.xpose.msra.mxu0 0
      %365 = vmatprep.subr.bf16.mxu0 0
      %366 = vmatpush1.bf16.xpose.msra.mxu0 0
      %367 = vmatprep.subr.bf16.mxu0 0
      %368 = vmatpush1.bf16.xpose.msra.mxu0 0
      %369 = vmatprep.subr.bf16.mxu0 0
      %370 = vmatpush1.bf16.xpose.msra.mxu0 0
      %371 = vmatprep.mubr.bf16.mxu0 0
      %372 = vmatmul.mubr.bf16.gmra.mrb[0].mxu0 %v334
      %v373 = vpop.f32.mrb[0].mxu0
      %v374 = vadd.f32 0.0, %v373
      %v375 = vpop.f32.mrb[0].mxu0
      %v376 = vpop.f32.mrb[0].mxu0
      %v377 = vpop.f32.mrb[0].mxu0
      %378 = vdwg.mxu0
      %v380 = vsel %vm240, %v223, 0
      %v383 = vsel %vm240, %v231, 0
      %385 = vmatprep.subr.bf16.mxu0 0
      %386 = vmatpush1.bf16.xpose.msra.mxu0 %v383
      %387 = vmatprep.subr.bf16.mxu0 0
      %388 = vmatpush1.bf16.xpose.msra.mxu0 0
      %389 = vmatprep.subr.bf16.mxu0 0
      %390 = vmatpush1.bf16.xpose.msra.mxu0 0
      %391 = vmatprep.subr.bf16.mxu0 0
      %392 = vmatpush1.bf16.xpose.msra.mxu0 0
      %393 = vmatprep.subr.bf16.mxu0 0
      %394 = vmatpush1.bf16.xpose.msra.mxu0 0
      %395 = vmatprep.subr.bf16.mxu0 0
      %396 = vmatpush1.bf16.xpose.msra.mxu0 0
      %397 = vmatprep.subr.bf16.mxu0 0
      %398 = vmatpush1.bf16.xpose.msra.mxu0 0
      %399 = vmatprep.subr.bf16.mxu0 0
      %400 = vmatpush1.bf16.xpose.msra.mxu0 0
      %401 = vmatprep.subr.bf16.mxu0 0
      %402 = vmatpush1.bf16.xpose.msra.mxu0 0
      %403 = vmatprep.subr.bf16.mxu0 0
      %404 = vmatpush1.bf16.xpose.msra.mxu0 0
      %405 = vmatprep.subr.bf16.mxu0 0
      %406 = vmatpush1.bf16.xpose.msra.mxu0 0
      %407 = vmatprep.subr.bf16.mxu0 0
      %408 = vmatpush1.bf16.xpose.msra.mxu0 0
      %409 = vmatprep.subr.bf16.mxu0 0
      %410 = vmatpush1.bf16.xpose.msra.mxu0 0
      %411 = vmatprep.subr.bf16.mxu0 0
      %412 = vmatpush1.bf16.xpose.msra.mxu0 0
      %413 = vmatprep.subr.bf16.mxu0 0
      %414 = vmatpush1.bf16.xpose.msra.mxu0 0
      %415 = vmatprep.subr.bf16.mxu0 0
      %416 = vmatpush1.bf16.xpose.msra.mxu0 0
      %417 = vmatprep.mubr.bf16.mxu0 0
      %418 = vmatmul.mubr.bf16.gmra.mrb[0].mxu0 %v380
      %v419 = vpop.f32.mrb[0].mxu0
      %v420 = vadd.f32 0.0, %v419
      %v421 = vpop.f32.mrb[0].mxu0
      %v422 = vpop.f32.mrb[0].mxu0
      %v423 = vpop.f32.mrb[0].mxu0
      %424 = vdwg.mxu0
      %v425 = vsel %vm240, %v282, -inf
      %426 = vmax.xlane.f32.xlu0 %v425
      %v427 = vpop.xlane.xlu0 %426
      %v428 = vsel %vm240, %v328, -inf
      %429 = vmax.xlane.f32.xlu0 %v428
      %v430 = vpop.xlane.xlu0 %429
      %v431 = vsel %vm240, %v374, -inf
      %432 = vmax.xlane.f32.xlu0 %v431
      %v433 = vpop.xlane.xlu0 %432
      %v434 = vsel %vm240, %v420, -inf
      %435 = vmax.xlane.f32.xlu0 %v434
      %v436 = vpop.xlane.xlu0 %435
      %v437 = vsub.f32 %v282, %v427
      %v438 = vsub.f32 %v328, %v430
      %v439 = vsub.f32 %v374, %v433
      %v440 = vsub.f32 %v420, %v436
      %v441 = vmul.f32 %v437, 1.442695
      %v442 = vpow.pop %v441
      %v443 = vmul.f32 %v438, 1.442695
      %v444 = vpow.pop %v443
      %v445 = vmul.f32 %v439, 1.442695
      %v446 = vpow.pop %v445
      %v447 = vmul.f32 %v440, 1.442695
      %v448 = vpow.pop %v447
      %v449 = vsel %vm240, %v442, 0.0
      %450 = vadd.xlane.f32.xlu0 %v449
      %v451 = vpop.xlane.xlu0 %450
      %v452 = vsel %vm240, %v444, 0.0
      %453 = vadd.xlane.f32.xlu0 %v452
      %v454 = vpop.xlane.xlu0 %453
      %v455 = vsel %vm240, %v446, 0.0
      %456 = vadd.xlane.f32.xlu0 %v455
      %v457 = vpop.xlane.xlu0 %456
      %v458 = vsel %vm240, %v448, 0.0
      %459 = vadd.xlane.f32.xlu0 %v458
      %v460 = vpop.xlane.xlu0 %459
      %v461 = vrcp.pop %v451
      %v462 = vrcp.pop %v454
      %v463 = vrcp.pop %v457
      %v464 = vrcp.pop %v460
      %v465 = vmul.f32 %v442, %v461
      %v466 = vmul.f32 %v444, %v462
      %v467 = vmul.f32 %v446, %v463
      %v468 = vmul.f32 %v448, %v464
      %v469 = vpack.c.bf16 %v465, %v465
      %v470 = vpack.c.bf16 %v466, %v466
      %v471 = vpack.c.bf16 %v467, %v467
      %v472 = vpack.c.bf16 %v468, %v468
      %v474 = vsel %vm240, %v469, 0
      %vm476 = vcmask 1043456
      %v478 = vsel %vm476, %v236, 0
      %480 = vmatprep.subr.bf16.mxu0 0
      %481 = vmatpush1.bf16.msra.mxu0 %v478
      %482 = vmatprep.subr.bf16.mxu0 0
      %483 = vmatpush1.bf16.msra.mxu0 0
      %484 = vmatprep.subr.bf16.mxu0 0
      %485 = vmatpush1.bf16.msra.mxu0 0
      %486 = vmatprep.subr.bf16.mxu0 0
      %487 = vmatpush1.bf16.msra.mxu0 0
      %488 = vmatprep.subr.bf16.mxu0 0
      %489 = vmatpush1.bf16.msra.mxu0 0
      %490 = vmatprep.subr.bf16.mxu0 0
      %491 = vmatpush1.bf16.msra.mxu0 0
      %492 = vmatprep.subr.bf16.mxu0 0
      %493 = vmatpush1.bf16.msra.mxu0 0
      %494 = vmatprep.subr.bf16.mxu0 0
      %495 = vmatpush1.bf16.msra.mxu0 0
      %496 = vmatprep.subr.bf16.mxu0 0
      %497 = vmatpush1.bf16.msra.mxu0 0
      %498 = vmatprep.subr.bf16.mxu0 0
      %499 = vmatpush1.bf16.msra.mxu0 0
      %500 = vmatprep.subr.bf16.mxu0 0
      %501 = vmatpush1.bf16.msra.mxu0 0
      %502 = vmatprep.subr.bf16.mxu0 0
      %503 = vmatpush1.bf16.msra.mxu0 0
      %504 = vmatprep.subr.bf16.mxu0 0
      %505 = vmatpush1.bf16.msra.mxu0 0
      %506 = vmatprep.subr.bf16.mxu0 0
      %507 = vmatpush1.bf16.msra.mxu0 0
      %508 = vmatprep.subr.bf16.mxu0 0
      %509 = vmatpush1.bf16.msra.mxu0 0
      %510 = vmatprep.subr.bf16.mxu0 0
      %511 = vmatpush1.bf16.msra.mxu0 0
      %512 = vmatprep.mubr.bf16.mxu0 0
      %513 = vmatmul.mubr.bf16.gmra.mrb[0].mxu0 %v474
      %v514 = vpop.f32.mrb[0].mxu0
      %v515 = vadd.f32 0.0, %v514
      %v516 = vpop.f32.mrb[0].mxu0
      %v517 = vpop.f32.mrb[0].mxu0
      %v518 = vpop.f32.mrb[0].mxu0
      %519 = vdwg.mxu0
      %v521 = vsel %vm240, %v470, 0
      %v524 = vsel %vm476, %v237, 0
      %526 = vmatprep.subr.bf16.mxu0 0
      %527 = vmatpush1.bf16.msra.mxu0 %v524
      %528 = vmatprep.subr.bf16.mxu0 0
      %529 = vmatpush1.bf16.msra.mxu0 0
      %530 = vmatprep.subr.bf16.mxu0 0
      %531 = vmatpush1.bf16.msra.mxu0 0
      %532 = vmatprep.subr.bf16.mxu0 0
      %533 = vmatpush1.bf16.msra.mxu0 0
      %534 = vmatprep.subr.bf16.mxu0 0
      %535 = vmatpush1.bf16.msra.mxu0 0
      %536 = vmatprep.subr.bf16.mxu0 0
      %537 = vmatpush1.bf16.msra.mxu0 0
      %538 = vmatprep.subr.bf16.mxu0 0
      %539 = vmatpush1.bf16.msra.mxu0 0
      %540 = vmatprep.subr.bf16.mxu0 0
      %541 = vmatpush1.bf16.msra.mxu0 0
      %542 = vmatprep.subr.bf16.mxu0 0
      %543 = vmatpush1.bf16.msra.mxu0 0
      %544 = vmatprep.subr.bf16.mxu0 0
      %545 = vmatpush1.bf16.msra.mxu0 0
      %546 = vmatprep.subr.bf16.mxu0 0
      %547 = vmatpush1.bf16.msra.mxu0 0
      %548 = vmatprep.subr.bf16.mxu0 0
      %549 = vmatpush1.bf16.msra.mxu0 0
      %550 = vmatprep.subr.bf16.mxu0 0
      %551 = vmatpush1.bf16.msra.mxu0 0
      %552 = vmatprep.subr.bf16.mxu0 0
      %553 = vmatpush1.bf16.msra.mxu0 0
      %554 = vmatprep.subr.bf16.mxu0 0
      %555 = vmatpush1.bf16.msra.mxu0 0
      %556 = vmatprep.subr.bf16.mxu0 0
      %557 = vmatpush1.bf16.msra.mxu0 0
      %558 = vmatprep.mubr.bf16.mxu0 0
      %559 = vmatmul.mubr.bf16.gmra.mrb[0].mxu0 %v521
      %v560 = vpop.f32.mrb[0].mxu0
      %v561 = vadd.f32 0.0, %v560
      %v562 = vpop.f32.mrb[0].mxu0
      %v563 = vpop.f32.mrb[0].mxu0
      %v564 = vpop.f32.mrb[0].mxu0
      %565 = vdwg.mxu0
      %v567 = vsel %vm240, %v471, 0
      %v570 = vsel %vm476, %v238, 0
      %572 = vmatprep.subr.bf16.mxu0 0
      %573 = vmatpush1.bf16.msra.mxu0 %v570
      %574 = vmatprep.subr.bf16.mxu0 0
      %575 = vmatpush1.bf16.msra.mxu0 0
      %576 = vmatprep.subr.bf16.mxu0 0
      %577 = vmatpush1.bf16.msra.mxu0 0
      %578 = vmatprep.subr.bf16.mxu0 0
      %579 = vmatpush1.bf16.msra.mxu0 0
      %580 = vmatprep.subr.bf16.mxu0 0
      %581 = vmatpush1.bf16.msra.mxu0 0
      %582 = vmatprep.subr.bf16.mxu0 0
      %583 = vmatpush1.bf16.msra.mxu0 0
      %584 = vmatprep.subr.bf16.mxu0 0
      %585 = vmatpush1.bf16.msra.mxu0 0
      %586 = vmatprep.subr.bf16.mxu0 0
      %587 = vmatpush1.bf16.msra.mxu0 0
      %588 = vmatprep.subr.bf16.mxu0 0
      %589 = vmatpush1.bf16.msra.mxu0 0
      %590 = vmatprep.subr.bf16.mxu0 0
      %591 = vmatpush1.bf16.msra.mxu0 0
      %592 = vmatprep.subr.bf16.mxu0 0
      %593 = vmatpush1.bf16.msra.mxu0 0
      %594 = vmatprep.subr.bf16.mxu0 0
      %595 = vmatpush1.bf16.msra.mxu0 0
      %596 = vmatprep.subr.bf16.mxu0 0
      %597 = vmatpush1.bf16.msra.mxu0 0
      %598 = vmatprep.subr.bf16.mxu0 0
      %599 = vmatpush1.bf16.msra.mxu0 0
      %600 = vmatprep.subr.bf16.mxu0 0
      %601 = vmatpush1.bf16.msra.mxu0 0
      %602 = vmatprep.subr.bf16.mxu0 0
      %603 = vmatpush1.bf16.msra.mxu0 0
      %604 = vmatprep.mubr.bf16.mxu0 0
      %605 = vmatmul.mubr.bf16.gmra.mrb[0].mxu0 %v567
      %v606 = vpop.f32.mrb[0].mxu0
      %v607 = vadd.f32 0.0, %v606
      %v608 = vpop.f32.mrb[0].mxu0
      %v609 = vpop.f32.mrb[0].mxu0
      %v610 = vpop.f32.mrb[0].mxu0
      %611 = vdwg.mxu0
      %v613 = vsel %vm240, %v472, 0
      %v616 = vsel %vm476, %v239, 0
      %618 = vmatprep.subr.bf16.mxu0 0
      %619 = vmatpush1.bf16.msra.mxu0 %v616
      %620 = vmatprep.subr.bf16.mxu0 0
      %621 = vmatpush1.bf16.msra.mxu0 0
      %622 = vmatprep.subr.bf16.mxu0 0
      %623 = vmatpush1.bf16.msra.mxu0 0
      %624 = vmatprep.subr.bf16.mxu0 0
      %625 = vmatpush1.bf16.msra.mxu0 0
      %626 = vmatprep.subr.bf16.mxu0 0
      %627 = vmatpush1.bf16.msra.mxu0 0
      %628 = vmatprep.subr.bf16.mxu0 0
      %629 = vmatpush1.bf16.msra.mxu0 0
      %630 = vmatprep.subr.bf16.mxu0 0
      %631 = vmatpush1.bf16.msra.mxu0 0
      %632 = vmatprep.subr.bf16.mxu0 0
      %633 = vmatpush1.bf16.msra.mxu0 0
      %634 = vmatprep.subr.bf16.mxu0 0
      %635 = vmatpush1.bf16.msra.mxu0 0
      %636 = vmatprep.subr.bf16.mxu0 0
      %637 = vmatpush1.bf16.msra.mxu0 0
      %638 = vmatprep.subr.bf16.mxu0 0
      %639 = vmatpush1.bf16.msra.mxu0 0
      %640 = vmatprep.subr.bf16.mxu0 0
      %641 = vmatpush1.bf16.msra.mxu0 0
      %642 = vmatprep.subr.bf16.mxu0 0
      %643 = vmatpush1.bf16.msra.mxu0 0
      %644 = vmatprep.subr.bf16.mxu0 0
      %645 = vmatpush1.bf16.msra.mxu0 0
      %646 = vmatprep.subr.bf16.mxu0 0
      %647 = vmatpush1.bf16.msra.mxu0 0
      %648 = vmatprep.subr.bf16.mxu0 0
      %649 = vmatpush1.bf16.msra.mxu0 0
      %650 = vmatprep.mubr.bf16.mxu0 0
      %651 = vmatmul.mubr.bf16.gmra.mrb[0].mxu0 %v613
      %v652 = vpop.f32.mrb[0].mxu0
      %v653 = vadd.f32 0.0, %v652
      %v654 = vpop.f32.mrb[0].mxu0
      %v655 = vpop.f32.mrb[0].mxu0
      %v656 = vpop.f32.mrb[0].mxu0
      %657 = vdwg.mxu0
      %658 = vst.msk [vmem:[%s210] sm:$0xff] %vm240, %v515
      %659 = vst.msk [vmem:[%s210 + $0x8] sm:$0xff] %vm240, %v561
      %660 = vst.msk [vmem:[%s210 + $0x10] sm:$0xff] %vm240, %v607
      %661 = vst.msk [vmem:[%s210 + $0x18] sm:$0xff] %vm240, %v653
      %p662 = scmp.lt.s32.totalorder %s14, 1
      %s663 = scalar_select %p662, %s14, 1
      %s664 = smul.addr %s663, 4
      %s665 = smul.addr %s664, 8
      %s666 = scalar_lea.vmem %s3, %s665
      // Predicated region
      $region33: #{decoder_forward.21} parent=31 // pred_check
        %p667 = pneg %p110
      $region34: #{decoder_forward.21} parent=31 // pred_check_branch
        %669 = sbr.rel (%p667) target = $region36
      $region35: #{decoder_forward.21} parent=31 // pred_region
        _
      $region36: #{decoder_forward.21} parent=31 // pred_fallthru
        _
    $region32: #{decoder_forward.21} parent=5 // pred_fallthru
      _
    %p670 = scmp.le.s32.totalorder 2, %s9
    // Predicated region
    $region37: #{decoder_forward.21} parent=5 // pred_check
      %p671 = pneg %p670
    $region38: #{decoder_forward.21} parent=5 // pred_check_branch
      %673 = sbr.rel (%p671) target = $region40
    $region39: #{decoder_forward.21} parent=5 // pred_region
      %s674 = ssub.s32 %s9, 2
      // Predicated region
      $region41: #{decoder_forward.21} parent=39 // pred_check
        %p675 = pneg %p116
      $region42: #{decoder_forward.21} parent=39 // pred_check_branch
        %677 = sbr.rel (%p675) target = $region44
      $region43: #{decoder_forward.21} parent=39 // pred_region
        %p678 = scmp.lt.s32.totalorder %s15, 1
        %s679 = scalar_select %p678, %s15, 1
        %s680 = smul.addr %s679, 4
        %s681 = smul.addr %s680, 8
        %s682 = scalar_lea.vmem %s3, %s681
      $region44: #{decoder_forward.21} parent=39 // pred_fallthru
        _
    $region40: #{decoder_forward.21} parent=5 // pred_fallthru
      _
  $region6: #{decoder_forward.21} parent=0 // loop_footer
    %s13 = sadd.s32 1, %s9
  $region7: #{decoder_forward.21} parent=0 // loop_footer_branch
    %8 = sbr.rel target = $region3
  $region8: #{decoder_forward.21} parent=0 // loop_exit
    _

</llo_original>
